<compile_context>
chip_gen: v5e
topology: v5e:2x2
jax: 0.10.0
libtpu: 0.0.40
codegen_flags: <defaults>
</compile_context>

<pallas_src>
import math

import jax
import jax.numpy as jnp
from jax import lax
from jax.experimental import pallas as pl
from jax.experimental.pallas import tpu as pltpu


def _round_up(x, m):
    return ((x + m - 1) // m) * m


def _sigmoid(x):
    # Single-EUP sigmoid: one tanh push instead of exp + reciprocal.
    return 0.5 * (jnp.tanh(0.5 * x) + 1.0)


def _vmem_limit_bytes():
    # Re-derive the VMEM budget per generation (~3/4 of physical: v5e/v6e 128 MiB -> 96 MiB,
    # v7x 64 MiB -> 48 MiB), with a conservative fallback.
    try:
        cap = int(pltpu.get_tpu_info().vmem_capacity_bytes)
    except Exception:
        cap = 64 * 1024 * 1024
    cap = max(cap, 32 * 1024 * 1024)
    return int(min(cap * 3 // 4, 100 * 1024 * 1024))


# -----------------------------------------------------------------------------
# Pallas kernel: one (batch-tile, time-tile) grid step of bi-GRU + final FC
# -----------------------------------------------------------------------------
def gru_fc_kernel(emb_f_ref, emb_b_ref, lens_ref,
                  wih_f_ref, bih_f_ref, whh_f_ref, bhhn_f_ref,
                  wih_b_ref, bih_b_ref, whh_b_ref, bhhn_b_ref,
                  wfc_ref, bfc_ref,
                  out_ref,
                  hf_ref, hb_ref, xf_ref, xb_ref):
    t_tile = pl.program_id(1)
    num_t = pl.num_programs(1)
    TT, Bb, Hin = emb_f_ref.shape          # Hin = true embedding width (may be < 128)
    Hp = hf_ref.shape[-1]                  # lane-padded hidden width
    G = 3 * Hp
    T_total = num_t * TT

    # Init hidden carries at the first time tile of each batch tile.
    @pl.when(t_tile == 0)
    def _():
        hf_ref[...] = jnp.zeros_like(hf_ref)
        hb_ref[...] = jnp.zeros_like(hb_ref)

    # ---- Hoisted input projections: one big GEMM per direction per tile ----
    # Bias = b_ih (+ b_hh for gates r,z, folded) added once here; slabs stored bf16.
    xf = emb_f_ref[...].reshape(TT * Bb, Hin)
    xb = emb_b_ref[...].reshape(TT * Bb, Hin)
    xf_ref[...] = (jnp.dot(xf, wih_f_ref[...], preferred_element_type=jnp.float32)
                   + bih_f_ref[...]).reshape(TT, Bb, G).astype(xf_ref.dtype)
    xb_ref[...] = (jnp.dot(xb, wih_b_ref[...], preferred_element_type=jnp.float32)
                   + bih_b_ref[...]).reshape(TT, Bb, G).astype(xb_ref.dtype)

    lens = lens_ref[...]                   # (Bb, 1) int32, hoisted out of the loop
    whh_f = whh_f_ref[...]
    whh_b = whh_b_ref[...]
    bhhn_f = bhhn_f_ref[...]               # (1, Hp): only b_hh[n] stays in the recurrence
    bhhn_b = bhhn_b_ref[...]

    def gru_gates(gx, gh, bhh_n, h):
        # gx = x@W_ih + b_ih (+ b_hh for r,z), gh = h@W_hh; fused gate order [r, z, n]
        r = _sigmoid(gx[:, 0:Hp] + gh[:, 0:Hp])
        z = _sigmoid(gx[:, Hp:2 * Hp] + gh[:, Hp:2 * Hp])
        n = jnp.tanh(gx[:, 2 * Hp:3 * Hp] + r * (gh[:, 2 * Hp:3 * Hp] + bhh_n))
        return (1.0 - z) * n + z * h

    def body(i, carry):
        h_f, h_b = carry
        # Two independent dependence chains (fwd + bwd) interleaved so one direction's
        # MXU push overlaps the other's gate math.
        gh_f = jnp.dot(h_f.astype(whh_f.dtype), whh_f, preferred_element_type=jnp.float32)
        gh_b = jnp.dot(h_b.astype(whh_b.dtype), whh_b, preferred_element_type=jnp.float32)
        hf_new = gru_gates(xf_ref[i], gh_f, bhhn_f, h_f)
        hb_new = gru_gates(xb_ref[TT - 1 - i], gh_b, bhhn_b, h_b)

        t_f = t_tile * TT + i
        t_b = T_total - 1 - t_f
        # pack_padded_sequence semantics: only update hidden on valid timesteps.
        h_f = jnp.where(t_f < lens, hf_new, h_f)
        h_b = jnp.where(t_b < lens, hb_new, h_b)
        return h_f, h_b

    unroll = TT if TT <= 8 else 8          # partial unroll: bound live ranges at large block_t
    h_f, h_b = lax.fori_loop(0, TT, body, (hf_ref[...], hb_ref[...]), unroll=unroll)
    hf_ref[...] = h_f
    hb_ref[...] = h_b

    # Final FC at the last time tile; torch: cat([hidden[-1] (bwd), hidden[-2] (fwd)], dim=1)
    @pl.when(t_tile == num_t - 1)
    def _():
        hidden_cat = jnp.concatenate([h_b, h_f], axis=-1)        # (Bb, 2*Hp) f32
        out_ref[...] = (jnp.dot(hidden_cat.astype(wfc_ref.dtype), wfc_ref[...],
                                preferred_element_type=jnp.float32)
                        + bfc_ref[...])


# -----------------------------------------------------------------------------
# Parameter preparation: pad to lane-dense shapes, fuse gates, fold r/z h-biases, cast to bf16
# -----------------------------------------------------------------------------
def _prepare_kernel_params(params, Hp, Op):
    V, H = params["emb_table"].shape
    O = params["w_fc"].shape[1]

    def fuse_wih(w):          # (3, H, H) -> (H, 3*Hp) bf16, gate order [r, z, n]
        out = jnp.zeros((H, 3 * Hp), jnp.float32)
        for g in range(3):
            out = out.at[:, g * Hp:g * Hp + H].set(w[g])
        return out.astype(jnp.bfloat16)

    def fuse_whh(w):          # (3, H, H) -> (Hp, 3*Hp) bf16
        out = jnp.zeros((Hp, 3 * Hp), jnp.float32)
        for g in range(3):
            out = out.at[:H, g * Hp:g * Hp + H].set(w[g])
        return out.astype(jnp.bfloat16)

    def fuse_bias(bih, bhh):  # r,z get b_ih+b_hh folded; n keeps only b_ih -> (1, 3*Hp) f32
        out = jnp.zeros((1, 3 * Hp), jnp.float32)
        out = out.at[0, 0:H].set(bih[0] + bhh[0])
        out = out.at[0, Hp:Hp + H].set(bih[1] + bhh[1])
        out = out.at[0, 2 * Hp:2 * Hp + H].set(bih[2])
        return out

    def bhh_n(bhh):           # (1, Hp) f32 — stays inside r*(W_hn h + b_hn)
        return jnp.zeros((1, Hp), jnp.float32).at[0, :H].set(bhh[2])

    # FC weight: rows [0:H] act on the backward hidden, rows [Hp:Hp+H] on the forward hidden.
    w_fc = jnp.zeros((2 * Hp, Op), jnp.float32)
    w_fc = w_fc.at[:H, :O].set(params["w_fc"][:H])
    w_fc = w_fc.at[Hp:Hp + H, :O].set(params["w_fc"][H:])
    b_fc = jnp.zeros((1, Op), jnp.float32).at[0, :O].set(params["b_fc"])

    return {
        "emb_table": params["emb_table"].astype(jnp.bfloat16),   # (V, H) — NOT lane-padded
        "wih_f": fuse_wih(params["wih_f"]),
        "bih_f": fuse_bias(params["bih_f"], params["bhh_f"]),
        "whh_f": fuse_whh(params["whh_f"]),
        "bhhn_f": bhh_n(params["bhh_f"]),
        "wih_b": fuse_wih(params["wih_b"]),
        "bih_b": fuse_bias(params["bih_b"], params["bhh_b"]),
        "whh_b": fuse_whh(params["whh_b"]),
        "bhhn_b": bhh_n(params["bhh_b"]),
        "w_fc": w_fc.astype(jnp.bfloat16), "b_fc": b_fc,
    }


# -----------------------------------------------------------------------------
# Forward wrapper
# -----------------------------------------------------------------------------
def rnn_classifier_forward(tokens, seq_lengths, params, *, block_t=16, block_b=None):
    """tokens: (B, T) int32, seq_lengths: (B,) int32. Returns (B, output_size) f32."""
    B, T = tokens.shape
    H = params["emb_table"].shape[1]
    O = params["w_fc"].shape[1]

    # Lane / sublane-dense padding for hidden, output and batch (zero-filled, semantics-preserving).
    Hp = _round_up(H, 128)
    Op = _round_up(O, 128)
    Bp = _round_up(B, 8)
    Tp = _round_up(T, block_t)
    if block_b is None:
        # v7x megacore: split the batch across the 2 TensorCores only when each half still has
        # >=128 sublane rows; on 1-TC chips (v5e/v6e) keep num_b=1 (less grid-step overhead).
        block_b = Bp // 2 if (Bp >= 256 and (Bp // 2) % 8 == 0) else Bp
    Bb = block_b
    assert Bp % Bb == 0 and Bb % 8 == 0 and Tp % block_t == 0

    kp = _prepare_kernel_params(params, Hp, Op)

    # TODO(synk): embedding gather stays in plain JAX (no clean generic Pallas gather path here).
    # Pad the (tiny) token matrix and gather directly — avoids an extra HBM write+read of the
    # big (Tp, Bp, H) slab. Padded rows/timesteps gather token 0; they are masked by lens.
    tokens_p = jnp.zeros((Bp, Tp), jnp.int32).at[:B, :T].set(tokens.astype(jnp.int32))
    emb = kp["emb_table"][tokens_p.T]                            # time-major (Tp, Bp, H) bf16
    lens = jnp.zeros((Bp, 1), jnp.int32).at[:B, 0].set(seq_lengths.astype(jnp.int32))

    num_b = Bp // Bb
    num_t = Tp // block_t

    def full(a):
        return pl.BlockSpec(a.shape, lambda b, t, _nd=a.ndim: (0,) * _nd)

    grid_spec = pltpu.PrefetchScalarGridSpec(
        num_scalar_prefetch=0,
        grid=(num_b, num_t),
        in_specs=[
            # Same emb array viewed twice: forward-ordered and mirrored time tiles.
            # Last dim = H = full array dim, so the (8,128) rule is satisfied without padding.
            pl.BlockSpec((block_t, Bb, H), lambda b, t: (t, b, 0)),
            pl.BlockSpec((block_t, Bb, H), lambda b, t: (num_t - 1 - t, b, 0)),
            pl.BlockSpec((Bb, 1), lambda b, t: (b, 0)),
            full(kp["wih_f"]), full(kp["bih_f"]), full(kp["whh_f"]), full(kp["bhhn_f"]),
            full(kp["wih_b"]), full(kp["bih_b"]), full(kp["whh_b"]), full(kp["bhhn_b"]),
            full(kp["w_fc"]), full(kp["b_fc"]),
        ],
        out_specs=pl.BlockSpec((Bb, Op), lambda b, t: (b, 0)),
        scratch_shapes=[
            pltpu.VMEM((Bb, Hp), jnp.float32),                   # h_fwd carry (f32)
            pltpu.VMEM((Bb, Hp), jnp.float32),                   # h_bwd carry (f32)
            pltpu.VMEM((block_t, Bb, 3 * Hp), jnp.bfloat16),     # fwd x-projection slab (bf16)
            pltpu.VMEM((block_t, Bb, 3 * Hp), jnp.bfloat16),     # bwd x-projection slab (bf16)
        ],
    )

    out_p = pl.pallas_call(
        gru_fc_kernel,
        out_shape=jax.ShapeDtypeStruct((Bp, Op), jnp.float32),
        grid_spec=grid_spec,
        compiler_params=pltpu.CompilerParams(
            dimension_semantics=("parallel", "arbitrary"),  # batch parallel (v7x megacore), time serial
            vmem_limit_bytes=_vmem_limit_bytes(),           # per-generation budget
        ),
    )(emb, emb, lens,
      kp["wih_f"], kp["bih_f"], kp["whh_f"], kp["bhhn_f"],
      kp["wih_b"], kp["bih_b"], kp["whh_b"], kp["bhhn_b"],
      kp["w_fc"], kp["b_fc"])

    return out_p[:B, :O]


# -----------------------------------------------------------------------------
# Deterministic parameter init (matches shapes of the PyTorch module, pre-transposed)
# -----------------------------------------------------------------------------
def init_params(key, input_size, hidden_size, output_size):
    H, O = hidden_size, output_size
    ks = jax.random.split(key, 11)
    bound = 1.0 / math.sqrt(H)

    def u(k, shape):
        return jax.random.uniform(k, shape, jnp.float32, -bound, bound)

    return {
        # nn.Embedding(input_size, hidden_size): N(0, 1)
        "emb_table": jax.random.normal(ks[0], (input_size, H), jnp.float32),
        # GRU weights pre-transposed to (in, out), stacked over gates [r, z, n]
        "wih_f": u(ks[1], (3, H, H)), "whh_f": u(ks[2], (3, H, H)),
        "bih_f": u(ks[3], (3, H)),    "bhh_f": u(ks[4], (3, H)),
        "wih_b": u(ks[5], (3, H, H)), "whh_b": u(ks[6], (3, H, H)),
        "bih_b": u(ks[7], (3, H)),    "bhh_b": u(ks[8], (3, H)),
        # nn.Linear(2H, O), pre-transposed to (2H, O)
        "w_fc": u(ks[9], (2 * H, O)), "b_fc": u(ks[10], (O,)),
    }


# -----------------------------------------------------------------------------
# Pure-JAX reference: standard GRU math, same numerics policy as the kernel
# (bf16 matmul operands; b_hh[r|z] folded into the hoisted input projection which
#  is rounded to bf16 — the kernel's x-slab dtype; h and gate math in f32).
# -----------------------------------------------------------------------------
def reference_forward(tokens, seq_lengths, params):
    B, T = tokens.shape
    H = params["emb_table"].shape[1]
    bf16 = lambda x: x.astype(jnp.bfloat16)
    emb = bf16(params["emb_table"])[tokens.T]        # (T, B, H) bf16
    lens = seq_lengths.reshape(B, 1).astype(jnp.int32)

    def run_dir(wih, whh, bih, bhh, reverse):
        h = jnp.zeros((B, H), jnp.float32)
        ts = range(T - 1, -1, -1) if reverse else range(T)
        for t in ts:
            x = emb[t]
            gx = []
            for g in range(3):
                v = jnp.dot(x, bf16(wih[g]), preferred_element_type=jnp.float32) + bih[g]
                if g < 2:                       # fold b_hh for r, z (as in the kernel)
                    v = v + bhh[g]
                gx.append(bf16(v).astype(jnp.float32))
            gh = [jnp.dot(bf16(h), bf16(whh[g]), preferred_element_type=jnp.float32)
                  for g in range(3)]
            r = jax.nn.sigmoid(gx[0] + gh[0])
            z = jax.nn.sigmoid(gx[1] + gh[1])
            n = jnp.tanh(gx[2] + r * (gh[2] + bhh[2]))
            h_new = (1.0 - z) * n + z * h
            h = jnp.where(t < lens, h_new, h)
        return h

    h_f = run_dir(params["wih_f"], params["whh_f"], params["bih_f"], params["bhh_f"], False)
    h_b = run_dir(params["wih_b"], params["whh_b"], params["bih_b"], params["bhh_b"], True)
    cat = jnp.concatenate([h_b, h_f], axis=-1)
    return jnp.dot(bf16(cat), bf16(params["w_fc"]),
                   preferred_element_type=jnp.float32) + params["b_fc"]


if __name__ == "__main__":
    # Small shapes: vocab=16, hidden=32, output=8, batch=8, seq_len=8
    VOCAB, HIDDEN, OUTPUT = 16, 32, 8
    B, T = 8, 8

    key = jax.random.PRNGKey(0)
    k_param, k_tok = jax.random.split(key)
    params = init_params(k_param, VOCAB, HIDDEN, OUTPUT)

    tokens = jax.random.randint(k_tok, (B, T), 0, VOCAB, dtype=jnp.int32)
    seq_lengths = jnp.array([8, 7, 7, 6, 5, 4, 3, 2], dtype=jnp.int32)  # sorted desc (pack_padded)

    # block_t=4 -> 2 time tiles, exercising the streamed-T grid and hidden-carry path.
    out = rnn_classifier_forward(tokens, seq_lengths, params, block_t=4)
    out = jax.block_until_ready(out)

    ref = reference_forward(tokens, seq_lengths, params)
    assert out.shape == (B, OUTPUT)
    max_diff = float(jnp.max(jnp.abs(out - ref)))
    assert jnp.allclose(out, ref, atol=1e-2, rtol=1e-2), f"mismatch vs reference, max|diff|={max_diff}"

    print("KERNEL_OK")
</pallas_src>

<mosaic_0001>
module attributes {stable_mosaic.version = 11 : i64} {
  func.func @gru_fc_kernel(%arg0: i32, %arg1: i32, %arg2: memref<4x8x32xbf16, #tpu.memory_space<vmem>>, %arg3: memref<4x8x32xbf16, #tpu.memory_space<vmem>>, %arg4: memref<8x1xi32, #tpu.memory_space<vmem>>, %arg5: memref<32x384xbf16, #tpu.memory_space<vmem>>, %arg6: memref<1x384xf32, #tpu.memory_space<vmem>>, %arg7: memref<128x384xbf16, #tpu.memory_space<vmem>>, %arg8: memref<1x128xf32, #tpu.memory_space<vmem>>, %arg9: memref<32x384xbf16, #tpu.memory_space<vmem>>, %arg10: memref<1x384xf32, #tpu.memory_space<vmem>>, %arg11: memref<128x384xbf16, #tpu.memory_space<vmem>>, %arg12: memref<1x128xf32, #tpu.memory_space<vmem>>, %arg13: memref<256x128xbf16, #tpu.memory_space<vmem>>, %arg14: memref<1x128xf32, #tpu.memory_space<vmem>>, %arg15: memref<8x128xf32, #tpu.memory_space<vmem>>, %arg16: memref<8x128xf32, #tpu.memory_space<vmem>>, %arg17: memref<8x128xf32, #tpu.memory_space<vmem>>, %arg18: memref<4x8x384xbf16, #tpu.memory_space<vmem>>, %arg19: memref<4x8x384xbf16, #tpu.memory_space<vmem>>) attributes {dimension_semantics = [#tpu.dimension_semantics<parallel>, #tpu.dimension_semantics<arbitrary>], iteration_bounds = array<i64: 1, 2>, scalar_prefetch = 0 : i64, scratch_operands = 4 : i64, tpu.core_type = #tpu.core_type<tc>, window_params = [{transform_indices = @transform_0, window_bounds = array<i64: 4, 8, 32>}, {transform_indices = @transform_1, window_bounds = array<i64: 4, 8, 32>}, {transform_indices = @transform_2, window_bounds = array<i64: 8, 1>}, {pipeline_mode = #tpu.pipeline_mode<synchronous>, transform_indices = @transform_3, window_bounds = array<i64: 32, 384>}, {pipeline_mode = #tpu.pipeline_mode<synchronous>, transform_indices = @transform_4, window_bounds = array<i64: 1, 384>}, {pipeline_mode = #tpu.pipeline_mode<synchronous>, transform_indices = @transform_5, window_bounds = array<i64: 128, 384>}, {pipeline_mode = #tpu.pipeline_mode<synchronous>, transform_indices = @transform_6, window_bounds = array<i64: 1, 128>}, {pipeline_mode = #tpu.pipeline_mode<synchronous>, transform_indices = @transform_7, window_bounds = array<i64: 32, 384>}, {pipeline_mode = #tpu.pipeline_mode<synchronous>, transform_indices = @transform_8, window_bounds = array<i64: 1, 384>}, {pipeline_mode = #tpu.pipeline_mode<synchronous>, transform_indices = @transform_9, window_bounds = array<i64: 128, 384>}, {pipeline_mode = #tpu.pipeline_mode<synchronous>, transform_indices = @transform_10, window_bounds = array<i64: 1, 128>}, {pipeline_mode = #tpu.pipeline_mode<synchronous>, transform_indices = @transform_11, window_bounds = array<i64: 256, 128>}, {pipeline_mode = #tpu.pipeline_mode<synchronous>, transform_indices = @transform_12, window_bounds = array<i64: 1, 128>}, {transform_indices = @transform_13, window_bounds = array<i64: 8, 128>}]} {
    %c0_i32 = arith.constant 0 : i32
    %0 = arith.cmpi eq, %arg1, %c0_i32 : i32
    %1 = arith.extui %0 : i1 to i32
    %c0_i32_0 = arith.constant 0 : i32
    %2 = arith.cmpi ne, %1, %c0_i32_0 : i32
    scf.if %2 {
      %cst_133 = arith.constant 0.000000e+00 : f32
      %411 = vector.broadcast %cst_133 : f32 to vector<8x128xf32>
      %c0_134 = arith.constant 0 : index
      %c0_135 = arith.constant 0 : index
      %412 = vector.load %arg16[%c0_134, %c0_135] : memref<8x128xf32, #tpu.memory_space<vmem>>, vector<8x128xf32>
      tpu.vector_store %arg16[%c0_134, %c0_135], %411 {strides = array<i32>} : memref<8x128xf32, #tpu.memory_space<vmem>>, vector<8x128xf32>,
      %cst_136 = arith.constant 0.000000e+00 : f32
      %413 = vector.broadcast %cst_136 : f32 to vector<8x128xf32>
      %c0_137 = arith.constant 0 : index
      %c0_138 = arith.constant 0 : index
      %414 = vector.load %arg17[%c0_137, %c0_138] : memref<8x128xf32, #tpu.memory_space<vmem>>, vector<8x128xf32>
      tpu.vector_store %arg17[%c0_137, %c0_138], %413 {strides = array<i32>} : memref<8x128xf32, #tpu.memory_space<vmem>>, vector<8x128xf32>,
    } else {
    }
    %c0 = arith.constant 0 : index
    %c0_1 = arith.constant 0 : index
    %c0_2 = arith.constant 0 : index
    %3 = vector.load %arg2[%c0, %c0_1, %c0_2] : memref<4x8x32xbf16, #tpu.memory_space<vmem>>, vector<4x8x32xbf16>
    %4 = vector.shape_cast %3 : vector<4x8x32xbf16> to vector<32x32xbf16>
    %c0_3 = arith.constant 0 : index
    %c0_4 = arith.constant 0 : index
    %c0_5 = arith.constant 0 : index
    %5 = vector.load %arg3[%c0_3, %c0_4, %c0_5] : memref<4x8x32xbf16, #tpu.memory_space<vmem>>, vector<4x8x32xbf16>
    %6 = vector.shape_cast %5 : vector<4x8x32xbf16> to vector<32x32xbf16>
    %c0_6 = arith.constant 0 : index
    %c0_7 = arith.constant 0 : index
    %7 = vector.load %arg5[%c0_6, %c0_7] : memref<32x384xbf16, #tpu.memory_space<vmem>>, vector<32x384xbf16>
    %cst = arith.constant dense<0.000000e+00> : vector<32x384xf32>
    %8 = tpu.matmul %4, %7, %cst {dimension_numbers = #tpu.dot_dimension_numbers<[1], [0], [0], [1], [0, 0, 1, 1], [], []>} : vector<32x32xbf16>, vector<32x384xbf16>, vector<32x384xf32> -> vector<32x384xf32>
    %c0_8 = arith.constant 0 : index
    %c0_9 = arith.constant 0 : index
    %9 = vector.load %arg6[%c0_8, %c0_9] : memref<1x384xf32, #tpu.memory_space<vmem>>, vector<1x384xf32>
    %10 = vector.broadcast %9 : vector<1x384xf32> to vector<32x384xf32>
    %11 = arith.addf %8, %10 : vector<32x384xf32>
    %12 = vector.shape_cast %11 : vector<32x384xf32> to vector<4x8x384xf32>
    %13 = arith.truncf %12 : vector<4x8x384xf32> to vector<4x8x384xbf16>
    %c0_10 = arith.constant 0 : index
    %c0_11 = arith.constant 0 : index
    %c0_12 = arith.constant 0 : index
    %14 = vector.load %arg18[%c0_10, %c0_11, %c0_12] : memref<4x8x384xbf16, #tpu.memory_space<vmem>>, vector<4x8x384xbf16>
    tpu.vector_store %arg18[%c0_10, %c0_11, %c0_12], %13 {strides = array<i32>} : memref<4x8x384xbf16, #tpu.memory_space<vmem>>, vector<4x8x384xbf16>,
    %c0_13 = arith.constant 0 : index
    %c0_14 = arith.constant 0 : index
    %15 = vector.load %arg9[%c0_13, %c0_14] : memref<32x384xbf16, #tpu.memory_space<vmem>>, vector<32x384xbf16>
    %cst_15 = arith.constant dense<0.000000e+00> : vector<32x384xf32>
    %16 = tpu.matmul %6, %15, %cst_15 {dimension_numbers = #tpu.dot_dimension_numbers<[1], [0], [0], [1], [0, 0, 1, 1], [], []>} : vector<32x32xbf16>, vector<32x384xbf16>, vector<32x384xf32> -> vector<32x384xf32>
    %c0_16 = arith.constant 0 : index
    %c0_17 = arith.constant 0 : index
    %17 = vector.load %arg10[%c0_16, %c0_17] : memref<1x384xf32, #tpu.memory_space<vmem>>, vector<1x384xf32>
    %18 = vector.broadcast %17 : vector<1x384xf32> to vector<32x384xf32>
    %19 = arith.addf %16, %18 : vector<32x384xf32>
    %20 = vector.shape_cast %19 : vector<32x384xf32> to vector<4x8x384xf32>
    %21 = arith.truncf %20 : vector<4x8x384xf32> to vector<4x8x384xbf16>
    %c0_18 = arith.constant 0 : index
    %c0_19 = arith.constant 0 : index
    %c0_20 = arith.constant 0 : index
    %22 = vector.load %arg19[%c0_18, %c0_19, %c0_20] : memref<4x8x384xbf16, #tpu.memory_space<vmem>>, vector<4x8x384xbf16>
    tpu.vector_store %arg19[%c0_18, %c0_19, %c0_20], %21 {strides = array<i32>} : memref<4x8x384xbf16, #tpu.memory_space<vmem>>, vector<4x8x384xbf16>,
    %c0_21 = arith.constant 0 : index
    %c0_22 = arith.constant 0 : index
    %23 = vector.load %arg4[%c0_21, %c0_22] : memref<8x1xi32, #tpu.memory_space<vmem>>, vector<8x1xi32>
    %c0_23 = arith.constant 0 : index
    %c0_24 = arith.constant 0 : index
    %24 = vector.load %arg7[%c0_23, %c0_24] : memref<128x384xbf16, #tpu.memory_space<vmem>>, vector<128x384xbf16>
    %c0_25 = arith.constant 0 : index
    %c0_26 = arith.constant 0 : index
    %25 = vector.load %arg11[%c0_25, %c0_26] : memref<128x384xbf16, #tpu.memory_space<vmem>>, vector<128x384xbf16>
    %c0_27 = arith.constant 0 : index
    %c0_28 = arith.constant 0 : index
    %26 = vector.load %arg8[%c0_27, %c0_28] : memref<1x128xf32, #tpu.memory_space<vmem>>, vector<1x128xf32>
    %c0_29 = arith.constant 0 : index
    %c0_30 = arith.constant 0 : index
    %27 = vector.load %arg12[%c0_29, %c0_30] : memref<1x128xf32, #tpu.memory_space<vmem>>, vector<1x128xf32>
    %c0_31 = arith.constant 0 : index
    %c0_32 = arith.constant 0 : index
    %28 = vector.load %arg16[%c0_31, %c0_32] : memref<8x128xf32, #tpu.memory_space<vmem>>, vector<8x128xf32>
    %c0_33 = arith.constant 0 : index
    %c0_34 = arith.constant 0 : index
    %29 = vector.load %arg17[%c0_33, %c0_34] : memref<8x128xf32, #tpu.memory_space<vmem>>, vector<8x128xf32>
    %c0_i32_35 = arith.constant 0 : i32
    %30 = arith.truncf %28 : vector<8x128xf32> to vector<8x128xbf16>
    %cst_36 = arith.constant dense<0.000000e+00> : vector<8x384xf32>
    %31 = tpu.matmul %30, %24, %cst_36 {dimension_numbers = #tpu.dot_dimension_numbers<[1], [0], [0], [1], [0, 0, 1, 1], [], []>} : vector<8x128xbf16>, vector<128x384xbf16>, vector<8x384xf32> -> vector<8x384xf32>
    %32 = arith.truncf %29 : vector<8x128xf32> to vector<8x128xbf16>
    %cst_37 = arith.constant dense<0.000000e+00> : vector<8x384xf32>
    %33 = tpu.matmul %32, %25, %cst_37 {dimension_numbers = #tpu.dot_dimension_numbers<[1], [0], [0], [1], [0, 0, 1, 1], [], []>} : vector<8x128xbf16>, vector<128x384xbf16>, vector<8x384xf32> -> vector<8x384xf32>
    %34 = arith.index_cast %c0_i32_35 : i32 to index
    %c0_38 = arith.constant 0 : index
    %c0_39 = arith.constant 0 : index
    %35 = vector.load %arg18[%34, %c0_38, %c0_39] : memref<4x8x384xbf16, #tpu.memory_space<vmem>>, vector<1x8x384xbf16>
    %36 = vector.shape_cast %35 : vector<1x8x384xbf16> to vector<8x384xbf16>
    %37 = vector.extract_strided_slice %36 {offsets = [0, 0], sizes = [8, 128], strides = [1, 1]} : vector<8x384xbf16> to vector<8x128xbf16>
    %38 = vector.extract_strided_slice %31 {offsets = [0, 0], sizes = [8, 128], strides = [1, 1]} : vector<8x384xf32> to vector<8x128xf32>
    %39 = arith.extf %37 : vector<8x128xbf16> to vector<8x128xf32>
    %40 = arith.addf %39, %38 : vector<8x128xf32>
    %cst_40 = arith.constant 5.000000e-01 : f32
    %41 = vector.broadcast %cst_40 : f32 to vector<8x128xf32>
    %42 = arith.mulf %41, %40 : vector<8x128xf32>
    %43 = math.tanh %42 : vector<8x128xf32>
    %cst_41 = arith.constant 1.000000e+00 : f32
    %44 = vector.broadcast %cst_41 : f32 to vector<8x128xf32>
    %45 = arith.addf %43, %44 : vector<8x128xf32>
    %cst_42 = arith.constant 5.000000e-01 : f32
    %46 = vector.broadcast %cst_42 : f32 to vector<8x128xf32>
    %47 = arith.mulf %46, %45 : vector<8x128xf32>
    %48 = vector.extract_strided_slice %36 {offsets = [0, 128], sizes = [8, 128], strides = [1, 1]} : vector<8x384xbf16> to vector<8x128xbf16>
    %49 = vector.extract_strided_slice %31 {offsets = [0, 128], sizes = [8, 128], strides = [1, 1]} : vector<8x384xf32> to vector<8x128xf32>
    %50 = arith.extf %48 : vector<8x128xbf16> to vector<8x128xf32>
    %51 = arith.addf %50, %49 : vector<8x128xf32>
    %cst_43 = arith.constant 5.000000e-01 : f32
    %52 = vector.broadcast %cst_43 : f32 to vector<8x128xf32>
    %53 = arith.mulf %52, %51 : vector<8x128xf32>
    %54 = math.tanh %53 : vector<8x128xf32>
    %cst_44 = arith.constant 1.000000e+00 : f32
    %55 = vector.broadcast %cst_44 : f32 to vector<8x128xf32>
    %56 = arith.addf %54, %55 : vector<8x128xf32>
    %cst_45 = arith.constant 5.000000e-01 : f32
    %57 = vector.broadcast %cst_45 : f32 to vector<8x128xf32>
    %58 = arith.mulf %57, %56 : vector<8x128xf32>
    %59 = vector.extract_strided_slice %36 {offsets = [0, 256], sizes = [8, 128], strides = [1, 1]} : vector<8x384xbf16> to vector<8x128xbf16>
    %60 = vector.extract_strided_slice %31 {offsets = [0, 256], sizes = [8, 128], strides = [1, 1]} : vector<8x384xf32> to vector<8x128xf32>
    %61 = vector.broadcast %26 : vector<1x128xf32> to vector<8x128xf32>
    %62 = arith.addf %60, %61 : vector<8x128xf32>
    %63 = arith.mulf %47, %62 : vector<8x128xf32>
    %64 = arith.extf %59 : vector<8x128xbf16> to vector<8x128xf32>
    %65 = arith.addf %64, %63 : vector<8x128xf32>
    %66 = math.tanh %65 : vector<8x128xf32>
    %cst_46 = arith.constant 1.000000e+00 : f32
    %67 = vector.broadcast %cst_46 : f32 to vector<8x128xf32>
    %68 = arith.subf %67, %58 : vector<8x128xf32>
    %69 = arith.mulf %68, %66 : vector<8x128xf32>
    %70 = arith.mulf %58, %28 : vector<8x128xf32>
    %71 = arith.addf %69, %70 : vector<8x128xf32>
    %c3_i32 = arith.constant 3 : i32
    %72 = arith.subi %c3_i32, %c0_i32_35 : i32
    %73 = arith.index_cast %72 : i32 to index
    %c0_47 = arith.constant 0 : index
    %c0_48 = arith.constant 0 : index
    %74 = vector.load %arg19[%73, %c0_47, %c0_48] : memref<4x8x384xbf16, #tpu.memory_space<vmem>>, vector<1x8x384xbf16>
    %75 = vector.shape_cast %74 : vector<1x8x384xbf16> to vector<8x384xbf16>
    %76 = vector.extract_strided_slice %75 {offsets = [0, 0], sizes = [8, 128], strides = [1, 1]} : vector<8x384xbf16> to vector<8x128xbf16>
    %77 = vector.extract_strided_slice %33 {offsets = [0, 0], sizes = [8, 128], strides = [1, 1]} : vector<8x384xf32> to vector<8x128xf32>
    %78 = arith.extf %76 : vector<8x128xbf16> to vector<8x128xf32>
    %79 = arith.addf %78, %77 : vector<8x128xf32>
    %cst_49 = arith.constant 5.000000e-01 : f32
    %80 = vector.broadcast %cst_49 : f32 to vector<8x128xf32>
    %81 = arith.mulf %80, %79 : vector<8x128xf32>
    %82 = math.tanh %81 : vector<8x128xf32>
    %cst_50 = arith.constant 1.000000e+00 : f32
    %83 = vector.broadcast %cst_50 : f32 to vector<8x128xf32>
    %84 = arith.addf %82, %83 : vector<8x128xf32>
    %cst_51 = arith.constant 5.000000e-01 : f32
    %85 = vector.broadcast %cst_51 : f32 to vector<8x128xf32>
    %86 = arith.mulf %85, %84 : vector<8x128xf32>
    %87 = vector.extract_strided_slice %75 {offsets = [0, 128], sizes = [8, 128], strides = [1, 1]} : vector<8x384xbf16> to vector<8x128xbf16>
    %88 = vector.extract_strided_slice %33 {offsets = [0, 128], sizes = [8, 128], strides = [1, 1]} : vector<8x384xf32> to vector<8x128xf32>
    %89 = arith.extf %87 : vector<8x128xbf16> to vector<8x128xf32>
    %90 = arith.addf %89, %88 : vector<8x128xf32>
    %cst_52 = arith.constant 5.000000e-01 : f32
    %91 = vector.broadcast %cst_52 : f32 to vector<8x128xf32>
    %92 = arith.mulf %91, %90 : vector<8x128xf32>
    %93 = math.tanh %92 : vector<8x128xf32>
    %cst_53 = arith.constant 1.000000e+00 : f32
    %94 = vector.broadcast %cst_53 : f32 to vector<8x128xf32>
    %95 = arith.addf %93, %94 : vector<8x128xf32>
    %cst_54 = arith.constant 5.000000e-01 : f32
    %96 = vector.broadcast %cst_54 : f32 to vector<8x128xf32>
    %97 = arith.mulf %96, %95 : vector<8x128xf32>
    %98 = vector.extract_strided_slice %75 {offsets = [0, 256], sizes = [8, 128], strides = [1, 1]} : vector<8x384xbf16> to vector<8x128xbf16>
    %99 = vector.extract_strided_slice %33 {offsets = [0, 256], sizes = [8, 128], strides = [1, 1]} : vector<8x384xf32> to vector<8x128xf32>
    %100 = vector.broadcast %27 : vector<1x128xf32> to vector<8x128xf32>
    %101 = arith.addf %99, %100 : vector<8x128xf32>
    %102 = arith.mulf %86, %101 : vector<8x128xf32>
    %103 = arith.extf %98 : vector<8x128xbf16> to vector<8x128xf32>
    %104 = arith.addf %103, %102 : vector<8x128xf32>
    %105 = math.tanh %104 : vector<8x128xf32>
    %cst_55 = arith.constant 1.000000e+00 : f32
    %106 = vector.broadcast %cst_55 : f32 to vector<8x128xf32>
    %107 = arith.subf %106, %97 : vector<8x128xf32>
    %108 = arith.mulf %107, %105 : vector<8x128xf32>
    %109 = arith.mulf %97, %29 : vector<8x128xf32>
    %110 = arith.addf %108, %109 : vector<8x128xf32>
    %c4_i32 = arith.constant 4 : i32
    %111 = arith.muli %arg1, %c4_i32 : i32
    %112 = arith.addi %111, %c0_i32_35 : i32
    %c7_i32 = arith.constant 7 : i32
    %113 = arith.subi %c7_i32, %112 : i32
    %114 = vector.broadcast %112 : i32 to vector<8x1xi32>
    %115 = arith.cmpi slt, %114, %23 : vector<8x1xi32>
    %116 = vector.shape_cast %115 : vector<8x1xi1> to vector<8x1xi1>
    %117 = vector.broadcast %116 : vector<8x1xi1> to vector<8x128xi1>
    %118 = arith.select %117, %71, %28 : vector<8x128xi1>, vector<8x128xf32>
    %119 = vector.broadcast %113 : i32 to vector<8x1xi32>
    %120 = arith.cmpi slt, %119, %23 : vector<8x1xi32>
    %121 = vector.shape_cast %120 : vector<8x1xi1> to vector<8x1xi1>
    %122 = vector.broadcast %121 : vector<8x1xi1> to vector<8x128xi1>
    %123 = arith.select %122, %110, %29 : vector<8x128xi1>, vector<8x128xf32>
    %c1_i32 = arith.constant 1 : i32
    %124 = arith.truncf %118 : vector<8x128xf32> to vector<8x128xbf16>
    %cst_56 = arith.constant dense<0.000000e+00> : vector<8x384xf32>
    %125 = tpu.matmul %124, %24, %cst_56 {dimension_numbers = #tpu.dot_dimension_numbers<[1], [0], [0], [1], [0, 0, 1, 1], [], []>} : vector<8x128xbf16>, vector<128x384xbf16>, vector<8x384xf32> -> vector<8x384xf32>
    %126 = arith.truncf %123 : vector<8x128xf32> to vector<8x128xbf16>
    %cst_57 = arith.constant dense<0.000000e+00> : vector<8x384xf32>
    %127 = tpu.matmul %126, %25, %cst_57 {dimension_numbers = #tpu.dot_dimension_numbers<[1], [0], [0], [1], [0, 0, 1, 1], [], []>} : vector<8x128xbf16>, vector<128x384xbf16>, vector<8x384xf32> -> vector<8x384xf32>
    %128 = arith.index_cast %c1_i32 : i32 to index
    %c0_58 = arith.constant 0 : index
    %c0_59 = arith.constant 0 : index
    %129 = vector.load %arg18[%128, %c0_58, %c0_59] : memref<4x8x384xbf16, #tpu.memory_space<vmem>>, vector<1x8x384xbf16>
    %130 = vector.shape_cast %129 : vector<1x8x384xbf16> to vector<8x384xbf16>
    %131 = vector.extract_strided_slice %130 {offsets = [0, 0], sizes = [8, 128], strides = [1, 1]} : vector<8x384xbf16> to vector<8x128xbf16>
    %132 = vector.extract_strided_slice %125 {offsets = [0, 0], sizes = [8, 128], strides = [1, 1]} : vector<8x384xf32> to vector<8x128xf32>
    %133 = arith.extf %131 : vector<8x128xbf16> to vector<8x128xf32>
    %134 = arith.addf %133, %132 : vector<8x128xf32>
    %cst_60 = arith.constant 5.000000e-01 : f32
    %135 = vector.broadcast %cst_60 : f32 to vector<8x128xf32>
    %136 = arith.mulf %135, %134 : vector<8x128xf32>
    %137 = math.tanh %136 : vector<8x128xf32>
    %cst_61 = arith.constant 1.000000e+00 : f32
    %138 = vector.broadcast %cst_61 : f32 to vector<8x128xf32>
    %139 = arith.addf %137, %138 : vector<8x128xf32>
    %cst_62 = arith.constant 5.000000e-01 : f32
    %140 = vector.broadcast %cst_62 : f32 to vector<8x128xf32>
    %141 = arith.mulf %140, %139 : vector<8x128xf32>
    %142 = vector.extract_strided_slice %130 {offsets = [0, 128], sizes = [8, 128], strides = [1, 1]} : vector<8x384xbf16> to vector<8x128xbf16>
    %143 = vector.extract_strided_slice %125 {offsets = [0, 128], sizes = [8, 128], strides = [1, 1]} : vector<8x384xf32> to vector<8x128xf32>
    %144 = arith.extf %142 : vector<8x128xbf16> to vector<8x128xf32>
    %145 = arith.addf %144, %143 : vector<8x128xf32>
    %cst_63 = arith.constant 5.000000e-01 : f32
    %146 = vector.broadcast %cst_63 : f32 to vector<8x128xf32>
    %147 = arith.mulf %146, %145 : vector<8x128xf32>
    %148 = math.tanh %147 : vector<8x128xf32>
    %cst_64 = arith.constant 1.000000e+00 : f32
    %149 = vector.broadcast %cst_64 : f32 to vector<8x128xf32>
    %150 = arith.addf %148, %149 : vector<8x128xf32>
    %cst_65 = arith.constant 5.000000e-01 : f32
    %151 = vector.broadcast %cst_65 : f32 to vector<8x128xf32>
    %152 = arith.mulf %151, %150 : vector<8x128xf32>
    %153 = vector.extract_strided_slice %130 {offsets = [0, 256], sizes = [8, 128], strides = [1, 1]} : vector<8x384xbf16> to vector<8x128xbf16>
    %154 = vector.extract_strided_slice %125 {offsets = [0, 256], sizes = [8, 128], strides = [1, 1]} : vector<8x384xf32> to vector<8x128xf32>
    %155 = vector.broadcast %26 : vector<1x128xf32> to vector<8x128xf32>
    %156 = arith.addf %154, %155 : vector<8x128xf32>
    %157 = arith.mulf %141, %156 : vector<8x128xf32>
    %158 = arith.extf %153 : vector<8x128xbf16> to vector<8x128xf32>
    %159 = arith.addf %158, %157 : vector<8x128xf32>
    %160 = math.tanh %159 : vector<8x128xf32>
    %cst_66 = arith.constant 1.000000e+00 : f32
    %161 = vector.broadcast %cst_66 : f32 to vector<8x128xf32>
    %162 = arith.subf %161, %152 : vector<8x128xf32>
    %163 = arith.mulf %162, %160 : vector<8x128xf32>
    %164 = arith.mulf %152, %118 : vector<8x128xf32>
    %165 = arith.addf %163, %164 : vector<8x128xf32>
    %c3_i32_67 = arith.constant 3 : i32
    %166 = arith.subi %c3_i32_67, %c1_i32 : i32
    %167 = arith.index_cast %166 : i32 to index
    %c0_68 = arith.constant 0 : index
    %c0_69 = arith.constant 0 : index
    %168 = vector.load %arg19[%167, %c0_68, %c0_69] : memref<4x8x384xbf16, #tpu.memory_space<vmem>>, vector<1x8x384xbf16>
    %169 = vector.shape_cast %168 : vector<1x8x384xbf16> to vector<8x384xbf16>
    %170 = vector.extract_strided_slice %169 {offsets = [0, 0], sizes = [8, 128], strides = [1, 1]} : vector<8x384xbf16> to vector<8x128xbf16>
    %171 = vector.extract_strided_slice %127 {offsets = [0, 0], sizes = [8, 128], strides = [1, 1]} : vector<8x384xf32> to vector<8x128xf32>
    %172 = arith.extf %170 : vector<8x128xbf16> to vector<8x128xf32>
    %173 = arith.addf %172, %171 : vector<8x128xf32>
    %cst_70 = arith.constant 5.000000e-01 : f32
    %174 = vector.broadcast %cst_70 : f32 to vector<8x128xf32>
    %175 = arith.mulf %174, %173 : vector<8x128xf32>
    %176 = math.tanh %175 : vector<8x128xf32>
    %cst_71 = arith.constant 1.000000e+00 : f32
    %177 = vector.broadcast %cst_71 : f32 to vector<8x128xf32>
    %178 = arith.addf %176, %177 : vector<8x128xf32>
    %cst_72 = arith.constant 5.000000e-01 : f32
    %179 = vector.broadcast %cst_72 : f32 to vector<8x128xf32>
    %180 = arith.mulf %179, %178 : vector<8x128xf32>
    %181 = vector.extract_strided_slice %169 {offsets = [0, 128], sizes = [8, 128], strides = [1, 1]} : vector<8x384xbf16> to vector<8x128xbf16>
    %182 = vector.extract_strided_slice %127 {offsets = [0, 128], sizes = [8, 128], strides = [1, 1]} : vector<8x384xf32> to vector<8x128xf32>
    %183 = arith.extf %181 : vector<8x128xbf16> to vector<8x128xf32>
    %184 = arith.addf %183, %182 : vector<8x128xf32>
    %cst_73 = arith.constant 5.000000e-01 : f32
    %185 = vector.broadcast %cst_73 : f32 to vector<8x128xf32>
    %186 = arith.mulf %185, %184 : vector<8x128xf32>
    %187 = math.tanh %186 : vector<8x128xf32>
    %cst_74 = arith.constant 1.000000e+00 : f32
    %188 = vector.broadcast %cst_74 : f32 to vector<8x128xf32>
    %189 = arith.addf %187, %188 : vector<8x128xf32>
    %cst_75 = arith.constant 5.000000e-01 : f32
    %190 = vector.broadcast %cst_75 : f32 to vector<8x128xf32>
    %191 = arith.mulf %190, %189 : vector<8x128xf32>
    %192 = vector.extract_strided_slice %169 {offsets = [0, 256], sizes = [8, 128], strides = [1, 1]} : vector<8x384xbf16> to vector<8x128xbf16>
    %193 = vector.extract_strided_slice %127 {offsets = [0, 256], sizes = [8, 128], strides = [1, 1]} : vector<8x384xf32> to vector<8x128xf32>
    %194 = vector.broadcast %27 : vector<1x128xf32> to vector<8x128xf32>
    %195 = arith.addf %193, %194 : vector<8x128xf32>
    %196 = arith.mulf %180, %195 : vector<8x128xf32>
    %197 = arith.extf %192 : vector<8x128xbf16> to vector<8x128xf32>
    %198 = arith.addf %197, %196 : vector<8x128xf32>
    %199 = math.tanh %198 : vector<8x128xf32>
    %cst_76 = arith.constant 1.000000e+00 : f32
    %200 = vector.broadcast %cst_76 : f32 to vector<8x128xf32>
    %201 = arith.subf %200, %191 : vector<8x128xf32>
    %202 = arith.mulf %201, %199 : vector<8x128xf32>
    %203 = arith.mulf %191, %123 : vector<8x128xf32>
    %204 = arith.addf %202, %203 : vector<8x128xf32>
    %c4_i32_77 = arith.constant 4 : i32
    %205 = arith.muli %arg1, %c4_i32_77 : i32
    %206 = arith.addi %205, %c1_i32 : i32
    %c7_i32_78 = arith.constant 7 : i32
    %207 = arith.subi %c7_i32_78, %206 : i32
    %208 = vector.broadcast %206 : i32 to vector<8x1xi32>
    %209 = arith.cmpi slt, %208, %23 : vector<8x1xi32>
    %210 = vector.shape_cast %209 : vector<8x1xi1> to vector<8x1xi1>
    %211 = vector.broadcast %210 : vector<8x1xi1> to vector<8x128xi1>
    %212 = arith.select %211, %165, %118 : vector<8x128xi1>, vector<8x128xf32>
    %213 = vector.broadcast %207 : i32 to vector<8x1xi32>
    %214 = arith.cmpi slt, %213, %23 : vector<8x1xi32>
    %215 = vector.shape_cast %214 : vector<8x1xi1> to vector<8x1xi1>
    %216 = vector.broadcast %215 : vector<8x1xi1> to vector<8x128xi1>
    %217 = arith.select %216, %204, %123 : vector<8x128xi1>, vector<8x128xf32>
    %c2_i32 = arith.constant 2 : i32
    %218 = arith.truncf %212 : vector<8x128xf32> to vector<8x128xbf16>
    %cst_79 = arith.constant dense<0.000000e+00> : vector<8x384xf32>
    %219 = tpu.matmul %218, %24, %cst_79 {dimension_numbers = #tpu.dot_dimension_numbers<[1], [0], [0], [1], [0, 0, 1, 1], [], []>} : vector<8x128xbf16>, vector<128x384xbf16>, vector<8x384xf32> -> vector<8x384xf32>
    %220 = arith.truncf %217 : vector<8x128xf32> to vector<8x128xbf16>
    %cst_80 = arith.constant dense<0.000000e+00> : vector<8x384xf32>
    %221 = tpu.matmul %220, %25, %cst_80 {dimension_numbers = #tpu.dot_dimension_numbers<[1], [0], [0], [1], [0, 0, 1, 1], [], []>} : vector<8x128xbf16>, vector<128x384xbf16>, vector<8x384xf32> -> vector<8x384xf32>
    %222 = arith.index_cast %c2_i32 : i32 to index
    %c0_81 = arith.constant 0 : index
    %c0_82 = arith.constant 0 : index
    %223 = vector.load %arg18[%222, %c0_81, %c0_82] : memref<4x8x384xbf16, #tpu.memory_space<vmem>>, vector<1x8x384xbf16>
    %224 = vector.shape_cast %223 : vector<1x8x384xbf16> to vector<8x384xbf16>
    %225 = vector.extract_strided_slice %224 {offsets = [0, 0], sizes = [8, 128], strides = [1, 1]} : vector<8x384xbf16> to vector<8x128xbf16>
    %226 = vector.extract_strided_slice %219 {offsets = [0, 0], sizes = [8, 128], strides = [1, 1]} : vector<8x384xf32> to vector<8x128xf32>
    %227 = arith.extf %225 : vector<8x128xbf16> to vector<8x128xf32>
    %228 = arith.addf %227, %226 : vector<8x128xf32>
    %cst_83 = arith.constant 5.000000e-01 : f32
    %229 = vector.broadcast %cst_83 : f32 to vector<8x128xf32>
    %230 = arith.mulf %229, %228 : vector<8x128xf32>
    %231 = math.tanh %230 : vector<8x128xf32>
    %cst_84 = arith.constant 1.000000e+00 : f32
    %232 = vector.broadcast %cst_84 : f32 to vector<8x128xf32>
    %233 = arith.addf %231, %232 : vector<8x128xf32>
    %cst_85 = arith.constant 5.000000e-01 : f32
    %234 = vector.broadcast %cst_85 : f32 to vector<8x128xf32>
    %235 = arith.mulf %234, %233 : vector<8x128xf32>
    %236 = vector.extract_strided_slice %224 {offsets = [0, 128], sizes = [8, 128], strides = [1, 1]} : vector<8x384xbf16> to vector<8x128xbf16>
    %237 = vector.extract_strided_slice %219 {offsets = [0, 128], sizes = [8, 128], strides = [1, 1]} : vector<8x384xf32> to vector<8x128xf32>
    %238 = arith.extf %236 : vector<8x128xbf16> to vector<8x128xf32>
    %239 = arith.addf %238, %237 : vector<8x128xf32>
    %cst_86 = arith.constant 5.000000e-01 : f32
    %240 = vector.broadcast %cst_86 : f32 to vector<8x128xf32>
    %241 = arith.mulf %240, %239 : vector<8x128xf32>
    %242 = math.tanh %241 : vector<8x128xf32>
    %cst_87 = arith.constant 1.000000e+00 : f32
    %243 = vector.broadcast %cst_87 : f32 to vector<8x128xf32>
    %244 = arith.addf %242, %243 : vector<8x128xf32>
    %cst_88 = arith.constant 5.000000e-01 : f32
    %245 = vector.broadcast %cst_88 : f32 to vector<8x128xf32>
    %246 = arith.mulf %245, %244 : vector<8x128xf32>
    %247 = vector.extract_strided_slice %224 {offsets = [0, 256], sizes = [8, 128], strides = [1, 1]} : vector<8x384xbf16> to vector<8x128xbf16>
    %248 = vector.extract_strided_slice %219 {offsets = [0, 256], sizes = [8, 128], strides = [1, 1]} : vector<8x384xf32> to vector<8x128xf32>
    %249 = vector.broadcast %26 : vector<1x128xf32> to vector<8x128xf32>
    %250 = arith.addf %248, %249 : vector<8x128xf32>
    %251 = arith.mulf %235, %250 : vector<8x128xf32>
    %252 = arith.extf %247 : vector<8x128xbf16> to vector<8x128xf32>
    %253 = arith.addf %252, %251 : vector<8x128xf32>
    %254 = math.tanh %253 : vector<8x128xf32>
    %cst_89 = arith.constant 1.000000e+00 : f32
    %255 = vector.broadcast %cst_89 : f32 to vector<8x128xf32>
    %256 = arith.subf %255, %246 : vector<8x128xf32>
    %257 = arith.mulf %256, %254 : vector<8x128xf32>
    %258 = arith.mulf %246, %212 : vector<8x128xf32>
    %259 = arith.addf %257, %258 : vector<8x128xf32>
    %c3_i32_90 = arith.constant 3 : i32
    %260 = arith.subi %c3_i32_90, %c2_i32 : i32
    %261 = arith.index_cast %260 : i32 to index
    %c0_91 = arith.constant 0 : index
    %c0_92 = arith.constant 0 : index
    %262 = vector.load %arg19[%261, %c0_91, %c0_92] : memref<4x8x384xbf16, #tpu.memory_space<vmem>>, vector<1x8x384xbf16>
    %263 = vector.shape_cast %262 : vector<1x8x384xbf16> to vector<8x384xbf16>
    %264 = vector.extract_strided_slice %263 {offsets = [0, 0], sizes = [8, 128], strides = [1, 1]} : vector<8x384xbf16> to vector<8x128xbf16>
    %265 = vector.extract_strided_slice %221 {offsets = [0, 0], sizes = [8, 128], strides = [1, 1]} : vector<8x384xf32> to vector<8x128xf32>
    %266 = arith.extf %264 : vector<8x128xbf16> to vector<8x128xf32>
    %267 = arith.addf %266, %265 : vector<8x128xf32>
    %cst_93 = arith.constant 5.000000e-01 : f32
    %268 = vector.broadcast %cst_93 : f32 to vector<8x128xf32>
    %269 = arith.mulf %268, %267 : vector<8x128xf32>
    %270 = math.tanh %269 : vector<8x128xf32>
    %cst_94 = arith.constant 1.000000e+00 : f32
    %271 = vector.broadcast %cst_94 : f32 to vector<8x128xf32>
    %272 = arith.addf %270, %271 : vector<8x128xf32>
    %cst_95 = arith.constant 5.000000e-01 : f32
    %273 = vector.broadcast %cst_95 : f32 to vector<8x128xf32>
    %274 = arith.mulf %273, %272 : vector<8x128xf32>
    %275 = vector.extract_strided_slice %263 {offsets = [0, 128], sizes = [8, 128], strides = [1, 1]} : vector<8x384xbf16> to vector<8x128xbf16>
    %276 = vector.extract_strided_slice %221 {offsets = [0, 128], sizes = [8, 128], strides = [1, 1]} : vector<8x384xf32> to vector<8x128xf32>
    %277 = arith.extf %275 : vector<8x128xbf16> to vector<8x128xf32>
    %278 = arith.addf %277, %276 : vector<8x128xf32>
    %cst_96 = arith.constant 5.000000e-01 : f32
    %279 = vector.broadcast %cst_96 : f32 to vector<8x128xf32>
    %280 = arith.mulf %279, %278 : vector<8x128xf32>
    %281 = math.tanh %280 : vector<8x128xf32>
    %cst_97 = arith.constant 1.000000e+00 : f32
    %282 = vector.broadcast %cst_97 : f32 to vector<8x128xf32>
    %283 = arith.addf %281, %282 : vector<8x128xf32>
    %cst_98 = arith.constant 5.000000e-01 : f32
    %284 = vector.broadcast %cst_98 : f32 to vector<8x128xf32>
    %285 = arith.mulf %284, %283 : vector<8x128xf32>
    %286 = vector.extract_strided_slice %263 {offsets = [0, 256], sizes = [8, 128], strides = [1, 1]} : vector<8x384xbf16> to vector<8x128xbf16>
    %287 = vector.extract_strided_slice %221 {offsets = [0, 256], sizes = [8, 128], strides = [1, 1]} : vector<8x384xf32> to vector<8x128xf32>
    %288 = vector.broadcast %27 : vector<1x128xf32> to vector<8x128xf32>
    %289 = arith.addf %287, %288 : vector<8x128xf32>
    %290 = arith.mulf %274, %289 : vector<8x128xf32>
    %291 = arith.extf %286 : vector<8x128xbf16> to vector<8x128xf32>
    %292 = arith.addf %291, %290 : vector<8x128xf32>
    %293 = math.tanh %292 : vector<8x128xf32>
    %cst_99 = arith.constant 1.000000e+00 : f32
    %294 = vector.broadcast %cst_99 : f32 to vector<8x128xf32>
    %295 = arith.subf %294, %285 : vector<8x128xf32>
    %296 = arith.mulf %295, %293 : vector<8x128xf32>
    %297 = arith.mulf %285, %217 : vector<8x128xf32>
    %298 = arith.addf %296, %297 : vector<8x128xf32>
    %c4_i32_100 = arith.constant 4 : i32
    %299 = arith.muli %arg1, %c4_i32_100 : i32
    %300 = arith.addi %299, %c2_i32 : i32
    %c7_i32_101 = arith.constant 7 : i32
    %301 = arith.subi %c7_i32_101, %300 : i32
    %302 = vector.broadcast %300 : i32 to vector<8x1xi32>
    %303 = arith.cmpi slt, %302, %23 : vector<8x1xi32>
    %304 = vector.shape_cast %303 : vector<8x1xi1> to vector<8x1xi1>
    %305 = vector.broadcast %304 : vector<8x1xi1> to vector<8x128xi1>
    %306 = arith.select %305, %259, %212 : vector<8x128xi1>, vector<8x128xf32>
    %307 = vector.broadcast %301 : i32 to vector<8x1xi32>
    %308 = arith.cmpi slt, %307, %23 : vector<8x1xi32>
    %309 = vector.shape_cast %308 : vector<8x1xi1> to vector<8x1xi1>
    %310 = vector.broadcast %309 : vector<8x1xi1> to vector<8x128xi1>
    %311 = arith.select %310, %298, %217 : vector<8x128xi1>, vector<8x128xf32>
    %c3_i32_102 = arith.constant 3 : i32
    %312 = arith.truncf %306 : vector<8x128xf32> to vector<8x128xbf16>
    %cst_103 = arith.constant dense<0.000000e+00> : vector<8x384xf32>
    %313 = tpu.matmul %312, %24, %cst_103 {dimension_numbers = #tpu.dot_dimension_numbers<[1], [0], [0], [1], [0, 0, 1, 1], [], []>} : vector<8x128xbf16>, vector<128x384xbf16>, vector<8x384xf32> -> vector<8x384xf32>
    %314 = arith.truncf %311 : vector<8x128xf32> to vector<8x128xbf16>
    %cst_104 = arith.constant dense<0.000000e+00> : vector<8x384xf32>
    %315 = tpu.matmul %314, %25, %cst_104 {dimension_numbers = #tpu.dot_dimension_numbers<[1], [0], [0], [1], [0, 0, 1, 1], [], []>} : vector<8x128xbf16>, vector<128x384xbf16>, vector<8x384xf32> -> vector<8x384xf32>
    %316 = arith.index_cast %c3_i32_102 : i32 to index
    %c0_105 = arith.constant 0 : index
    %c0_106 = arith.constant 0 : index
    %317 = vector.load %arg18[%316, %c0_105, %c0_106] : memref<4x8x384xbf16, #tpu.memory_space<vmem>>, vector<1x8x384xbf16>
    %318 = vector.shape_cast %317 : vector<1x8x384xbf16> to vector<8x384xbf16>
    %319 = vector.extract_strided_slice %318 {offsets = [0, 0], sizes = [8, 128], strides = [1, 1]} : vector<8x384xbf16> to vector<8x128xbf16>
    %320 = vector.extract_strided_slice %313 {offsets = [0, 0], sizes = [8, 128], strides = [1, 1]} : vector<8x384xf32> to vector<8x128xf32>
    %321 = arith.extf %319 : vector<8x128xbf16> to vector<8x128xf32>
    %322 = arith.addf %321, %320 : vector<8x128xf32>
    %cst_107 = arith.constant 5.000000e-01 : f32
    %323 = vector.broadcast %cst_107 : f32 to vector<8x128xf32>
    %324 = arith.mulf %323, %322 : vector<8x128xf32>
    %325 = math.tanh %324 : vector<8x128xf32>
    %cst_108 = arith.constant 1.000000e+00 : f32
    %326 = vector.broadcast %cst_108 : f32 to vector<8x128xf32>
    %327 = arith.addf %325, %326 : vector<8x128xf32>
    %cst_109 = arith.constant 5.000000e-01 : f32
    %328 = vector.broadcast %cst_109 : f32 to vector<8x128xf32>
    %329 = arith.mulf %328, %327 : vector<8x128xf32>
    %330 = vector.extract_strided_slice %318 {offsets = [0, 128], sizes = [8, 128], strides = [1, 1]} : vector<8x384xbf16> to vector<8x128xbf16>
    %331 = vector.extract_strided_slice %313 {offsets = [0, 128], sizes = [8, 128], strides = [1, 1]} : vector<8x384xf32> to vector<8x128xf32>
    %332 = arith.extf %330 : vector<8x128xbf16> to vector<8x128xf32>
    %333 = arith.addf %332, %331 : vector<8x128xf32>
    %cst_110 = arith.constant 5.000000e-01 : f32
    %334 = vector.broadcast %cst_110 : f32 to vector<8x128xf32>
    %335 = arith.mulf %334, %333 : vector<8x128xf32>
    %336 = math.tanh %335 : vector<8x128xf32>
    %cst_111 = arith.constant 1.000000e+00 : f32
    %337 = vector.broadcast %cst_111 : f32 to vector<8x128xf32>
    %338 = arith.addf %336, %337 : vector<8x128xf32>
    %cst_112 = arith.constant 5.000000e-01 : f32
    %339 = vector.broadcast %cst_112 : f32 to vector<8x128xf32>
    %340 = arith.mulf %339, %338 : vector<8x128xf32>
    %341 = vector.extract_strided_slice %318 {offsets = [0, 256], sizes = [8, 128], strides = [1, 1]} : vector<8x384xbf16> to vector<8x128xbf16>
    %342 = vector.extract_strided_slice %313 {offsets = [0, 256], sizes = [8, 128], strides = [1, 1]} : vector<8x384xf32> to vector<8x128xf32>
    %343 = vector.broadcast %26 : vector<1x128xf32> to vector<8x128xf32>
    %344 = arith.addf %342, %343 : vector<8x128xf32>
    %345 = arith.mulf %329, %344 : vector<8x128xf32>
    %346 = arith.extf %341 : vector<8x128xbf16> to vector<8x128xf32>
    %347 = arith.addf %346, %345 : vector<8x128xf32>
    %348 = math.tanh %347 : vector<8x128xf32>
    %cst_113 = arith.constant 1.000000e+00 : f32
    %349 = vector.broadcast %cst_113 : f32 to vector<8x128xf32>
    %350 = arith.subf %349, %340 : vector<8x128xf32>
    %351 = arith.mulf %350, %348 : vector<8x128xf32>
    %352 = arith.mulf %340, %306 : vector<8x128xf32>
    %353 = arith.addf %351, %352 : vector<8x128xf32>
    %c3_i32_114 = arith.constant 3 : i32
    %354 = arith.subi %c3_i32_114, %c3_i32_102 : i32
    %355 = arith.index_cast %354 : i32 to index
    %c0_115 = arith.constant 0 : index
    %c0_116 = arith.constant 0 : index
    %356 = vector.load %arg19[%355, %c0_115, %c0_116] : memref<4x8x384xbf16, #tpu.memory_space<vmem>>, vector<1x8x384xbf16>
    %357 = vector.shape_cast %356 : vector<1x8x384xbf16> to vector<8x384xbf16>
    %358 = vector.extract_strided_slice %357 {offsets = [0, 0], sizes = [8, 128], strides = [1, 1]} : vector<8x384xbf16> to vector<8x128xbf16>
    %359 = vector.extract_strided_slice %315 {offsets = [0, 0], sizes = [8, 128], strides = [1, 1]} : vector<8x384xf32> to vector<8x128xf32>
    %360 = arith.extf %358 : vector<8x128xbf16> to vector<8x128xf32>
    %361 = arith.addf %360, %359 : vector<8x128xf32>
    %cst_117 = arith.constant 5.000000e-01 : f32
    %362 = vector.broadcast %cst_117 : f32 to vector<8x128xf32>
    %363 = arith.mulf %362, %361 : vector<8x128xf32>
    %364 = math.tanh %363 : vector<8x128xf32>
    %cst_118 = arith.constant 1.000000e+00 : f32
    %365 = vector.broadcast %cst_118 : f32 to vector<8x128xf32>
    %366 = arith.addf %364, %365 : vector<8x128xf32>
    %cst_119 = arith.constant 5.000000e-01 : f32
    %367 = vector.broadcast %cst_119 : f32 to vector<8x128xf32>
    %368 = arith.mulf %367, %366 : vector<8x128xf32>
    %369 = vector.extract_strided_slice %357 {offsets = [0, 128], sizes = [8, 128], strides = [1, 1]} : vector<8x384xbf16> to vector<8x128xbf16>
    %370 = vector.extract_strided_slice %315 {offsets = [0, 128], sizes = [8, 128], strides = [1, 1]} : vector<8x384xf32> to vector<8x128xf32>
    %371 = arith.extf %369 : vector<8x128xbf16> to vector<8x128xf32>
    %372 = arith.addf %371, %370 : vector<8x128xf32>
    %cst_120 = arith.constant 5.000000e-01 : f32
    %373 = vector.broadcast %cst_120 : f32 to vector<8x128xf32>
    %374 = arith.mulf %373, %372 : vector<8x128xf32>
    %375 = math.tanh %374 : vector<8x128xf32>
    %cst_121 = arith.constant 1.000000e+00 : f32
    %376 = vector.broadcast %cst_121 : f32 to vector<8x128xf32>
    %377 = arith.addf %375, %376 : vector<8x128xf32>
    %cst_122 = arith.constant 5.000000e-01 : f32
    %378 = vector.broadcast %cst_122 : f32 to vector<8x128xf32>
    %379 = arith.mulf %378, %377 : vector<8x128xf32>
    %380 = vector.extract_strided_slice %357 {offsets = [0, 256], sizes = [8, 128], strides = [1, 1]} : vector<8x384xbf16> to vector<8x128xbf16>
    %381 = vector.extract_strided_slice %315 {offsets = [0, 256], sizes = [8, 128], strides = [1, 1]} : vector<8x384xf32> to vector<8x128xf32>
    %382 = vector.broadcast %27 : vector<1x128xf32> to vector<8x128xf32>
    %383 = arith.addf %381, %382 : vector<8x128xf32>
    %384 = arith.mulf %368, %383 : vector<8x128xf32>
    %385 = arith.extf %380 : vector<8x128xbf16> to vector<8x128xf32>
    %386 = arith.addf %385, %384 : vector<8x128xf32>
    %387 = math.tanh %386 : vector<8x128xf32>
    %cst_123 = arith.constant 1.000000e+00 : f32
    %388 = vector.broadcast %cst_123 : f32 to vector<8x128xf32>
    %389 = arith.subf %388, %379 : vector<8x128xf32>
    %390 = arith.mulf %389, %387 : vector<8x128xf32>
    %391 = arith.mulf %379, %311 : vector<8x128xf32>
    %392 = arith.addf %390, %391 : vector<8x128xf32>
    %c4_i32_124 = arith.constant 4 : i32
    %393 = arith.muli %arg1, %c4_i32_124 : i32
    %394 = arith.addi %393, %c3_i32_102 : i32
    %c7_i32_125 = arith.constant 7 : i32
    %395 = arith.subi %c7_i32_125, %394 : i32
    %396 = vector.broadcast %394 : i32 to vector<8x1xi32>
    %397 = arith.cmpi slt, %396, %23 : vector<8x1xi32>
    %398 = vector.shape_cast %397 : vector<8x1xi1> to vector<8x1xi1>
    %399 = vector.broadcast %398 : vector<8x1xi1> to vector<8x128xi1>
    %400 = arith.select %399, %353, %306 : vector<8x128xi1>, vector<8x128xf32>
    %401 = vector.broadcast %395 : i32 to vector<8x1xi32>
    %402 = arith.cmpi slt, %401, %23 : vector<8x1xi32>
    %403 = vector.shape_cast %402 : vector<8x1xi1> to vector<8x1xi1>
    %404 = vector.broadcast %403 : vector<8x1xi1> to vector<8x128xi1>
    %405 = arith.select %404, %392, %311 : vector<8x128xi1>, vector<8x128xf32>
    %c4_i32_126 = arith.constant 4 : i32
    %c0_127 = arith.constant 0 : index
    %c0_128 = arith.constant 0 : index
    %406 = vector.load %arg16[%c0_127, %c0_128] : memref<8x128xf32, #tpu.memory_space<vmem>>, vector<8x128xf32>
    tpu.vector_store %arg16[%c0_127, %c0_128], %400 {strides = array<i32>} : memref<8x128xf32, #tpu.memory_space<vmem>>, vector<8x128xf32>,
    %c0_129 = arith.constant 0 : index
    %c0_130 = arith.constant 0 : index
    %407 = vector.load %arg17[%c0_129, %c0_130] : memref<8x128xf32, #tpu.memory_space<vmem>>, vector<8x128xf32>
    tpu.vector_store %arg17[%c0_129, %c0_130], %405 {strides = array<i32>} : memref<8x128xf32, #tpu.memory_space<vmem>>, vector<8x128xf32>,
    %c1_i32_131 = arith.constant 1 : i32
    %408 = arith.cmpi eq, %arg1, %c1_i32_131 : i32
    %409 = arith.extui %408 : i1 to i32
    %c0_i32_132 = arith.constant 0 : i32
    %410 = arith.cmpi ne, %409, %c0_i32_132 : i32
    scf.if %410 {
      %411 = tpu.concatenate %405, %400 in 1 : vector<8x128xf32>, vector<8x128xf32> -> vector<8x256xf32>
      %412 = arith.truncf %411 : vector<8x256xf32> to vector<8x256xbf16>
      %c0_133 = arith.constant 0 : index
      %c0_134 = arith.constant 0 : index
      %413 = vector.load %arg13[%c0_133, %c0_134] : memref<256x128xbf16, #tpu.memory_space<vmem>>, vector<256x128xbf16>
      %cst_135 = arith.constant dense<0.000000e+00> : vector<8x128xf32>
      %414 = tpu.matmul %412, %413, %cst_135 {dimension_numbers = #tpu.dot_dimension_numbers<[1], [0], [0], [1], [0, 0, 1, 1], [], []>} : vector<8x256xbf16>, vector<256x128xbf16>, vector<8x128xf32> -> vector<8x128xf32>
      %c0_136 = arith.constant 0 : index
      %c0_137 = arith.constant 0 : index
      %415 = vector.load %arg14[%c0_136, %c0_137] : memref<1x128xf32, #tpu.memory_space<vmem>>, vector<1x128xf32>
      %416 = vector.broadcast %415 : vector<1x128xf32> to vector<8x128xf32>
      %417 = arith.addf %414, %416 : vector<8x128xf32>
      %c0_138 = arith.constant 0 : index
      %c0_139 = arith.constant 0 : index
      %418 = vector.load %arg15[%c0_138, %c0_139] : memref<8x128xf32, #tpu.memory_space<vmem>>, vector<8x128xf32>
      tpu.vector_store %arg15[%c0_138, %c0_139], %417 {strides = array<i32>} : memref<8x128xf32, #tpu.memory_space<vmem>>, vector<8x128xf32>,
    } else {
    }
    return
  }
  func.func @transform_0(%arg0: i32, %arg1: i32) -> (i32, i32, i32) {
    %c0_i32 = arith.constant 0 : i32
    %c0_i32_0 = arith.constant 0 : i32
    return %arg1, %arg0, %c0_i32 : i32, i32, i32
  }
  func.func @transform_1(%arg0: i32, %arg1: i32) -> (i32, i32, i32) {
    %c1_i32 = arith.constant 1 : i32
    %0 = arith.subi %c1_i32, %arg1 : i32
    %c0_i32 = arith.constant 0 : i32
    %c0_i32_0 = arith.constant 0 : i32
    return %0, %arg0, %c0_i32 : i32, i32, i32
  }
  func.func @transform_2(%arg0: i32, %arg1: i32) -> (i32, i32) {
    %c0_i32 = arith.constant 0 : i32
    %c0_i32_0 = arith.constant 0 : i32
    return %arg0, %c0_i32 : i32, i32
  }
  func.func @transform_3(%arg0: i32, %arg1: i32) -> (i32, i32) {
    %c0_i32 = arith.constant 0 : i32
    %c0_i32_0 = arith.constant 0 : i32
    %c0_i32_1 = arith.constant 0 : i32
    return %c0_i32, %c0_i32_0 : i32, i32
  }
  func.func @transform_4(%arg0: i32, %arg1: i32) -> (i32, i32) {
    %c0_i32 = arith.constant 0 : i32
    %c0_i32_0 = arith.constant 0 : i32
    %c0_i32_1 = arith.constant 0 : i32
    return %c0_i32, %c0_i32_0 : i32, i32
  }
  func.func @transform_5(%arg0: i32, %arg1: i32) -> (i32, i32) {
    %c0_i32 = arith.constant 0 : i32
    %c0_i32_0 = arith.constant 0 : i32
    %c0_i32_1 = arith.constant 0 : i32
    return %c0_i32, %c0_i32_0 : i32, i32
  }
  func.func @transform_6(%arg0: i32, %arg1: i32) -> (i32, i32) {
    %c0_i32 = arith.constant 0 : i32
    %c0_i32_0 = arith.constant 0 : i32
    %c0_i32_1 = arith.constant 0 : i32
    return %c0_i32, %c0_i32_0 : i32, i32
  }
  func.func @transform_7(%arg0: i32, %arg1: i32) -> (i32, i32) {
    %c0_i32 = arith.constant 0 : i32
    %c0_i32_0 = arith.constant 0 : i32
    %c0_i32_1 = arith.constant 0 : i32
    return %c0_i32, %c0_i32_0 : i32, i32
  }
  func.func @transform_8(%arg0: i32, %arg1: i32) -> (i32, i32) {
    %c0_i32 = arith.constant 0 : i32
    %c0_i32_0 = arith.constant 0 : i32
    %c0_i32_1 = arith.constant 0 : i32
    return %c0_i32, %c0_i32_0 : i32, i32
  }
  func.func @transform_9(%arg0: i32, %arg1: i32) -> (i32, i32) {
    %c0_i32 = arith.constant 0 : i32
    %c0_i32_0 = arith.constant 0 : i32
    %c0_i32_1 = arith.constant 0 : i32
    return %c0_i32, %c0_i32_0 : i32, i32
  }
  func.func @transform_10(%arg0: i32, %arg1: i32) -> (i32, i32) {
    %c0_i32 = arith.constant 0 : i32
    %c0_i32_0 = arith.constant 0 : i32
    %c0_i32_1 = arith.constant 0 : i32
    return %c0_i32, %c0_i32_0 : i32, i32
  }
  func.func @transform_11(%arg0: i32, %arg1: i32) -> (i32, i32) {
    %c0_i32 = arith.constant 0 : i32
    %c0_i32_0 = arith.constant 0 : i32
    %c0_i32_1 = arith.constant 0 : i32
    return %c0_i32, %c0_i32_0 : i32, i32
  }
  func.func @transform_12(%arg0: i32, %arg1: i32) -> (i32, i32) {
    %c0_i32 = arith.constant 0 : i32
    %c0_i32_0 = arith.constant 0 : i32
    %c0_i32_1 = arith.constant 0 : i32
    return %c0_i32, %c0_i32_0 : i32, i32
  }
  func.func @transform_13(%arg0: i32, %arg1: i32) -> (i32, i32) {
    %c0_i32 = arith.constant 0 : i32
    %c0_i32_0 = arith.constant 0 : i32
    return %arg0, %c0_i32 : i32, i32
  }
}

</mosaic_0001>

<llo_original>
// kernel: tpu_custom_call.1
$region0: #{tpu_custom_call.1}
  #allocation0 [shape = 'u32[]', space=smem, size = 0x4, offset = 0x4, fixed_abs, tag = 'smem constant byte address 0x4 - core index']
  #allocation1 [shape = 'u32[72,128]{1,0:T(1,128)}', space=vmem, size = 0x9000, scoped, tag = 'internal scratch']
  #allocation2 [shape = 'f32[8,128]{1,0:T(8,128)}', space=vmem, size = 0x1000, scoped, tag = 'scratch operand']
  #allocation3 [shape = 'f32[8,128]{1,0:T(8,128)}', space=vmem, size = 0x1000, scoped, tag = 'scratch operand']
  #allocation4 [shape = 'bf16[4,8,384]{2,1,0:T(8,128)(2,1)}', space=vmem, size = 0x6000, scoped, tag = 'scratch operand']
  #allocation5 [shape = 'bf16[4,8,384]{2,1,0:T(8,128)(2,1)}', space=vmem, size = 0x6000, scoped, tag = 'scratch operand']
  %s0 = inlined_call_operand.hbm [shape: bf16[8,8,32], index: 0, kind: input, shape index: {}]
  %s1 = inlined_call_operand.hbm [shape: bf16[8,8,32], index: 1, kind: input, shape index: {}]
  %s2 = inlined_call_operand.vmem [shape: s32[8,1], index: 2, kind: input, shape index: {}]
  %s3 = inlined_call_operand.hbm [shape: bf16[32,384], index: 3, kind: input, shape index: {}]
  %s4 = inlined_call_operand.vmem [shape: f32[1,384], index: 4, kind: input, shape index: {}]
  %s5 = inlined_call_operand.hbm [shape: bf16[128,384], index: 5, kind: input, shape index: {}]
  %s6 = inlined_call_operand.vmem [shape: f32[1,128], index: 6, kind: input, shape index: {}]
  %s7 = inlined_call_operand.hbm [shape: bf16[32,384], index: 7, kind: input, shape index: {}]
  %s8 = inlined_call_operand.vmem [shape: f32[1,384], index: 8, kind: input, shape index: {}]
  %s9 = inlined_call_operand.hbm [shape: bf16[128,384], index: 9, kind: input, shape index: {}]
  %s10 = inlined_call_operand.vmem [shape: f32[1,128], index: 10, kind: input, shape index: {}]
  %s11 = inlined_call_operand.hbm [shape: bf16[256,128], index: 11, kind: input, shape index: {}]
  %s12 = inlined_call_operand.vmem [shape: f32[1,128], index: 12, kind: input, shape index: {}]
  %s13 = inlined_call_operand.hbm [shape: f32[8,128], index: 13, kind: output, shape index: {}]
  %s14 = sld [smem:[#allocation0]]
  $region121: #{tpu_custom_call.1} parent=0
    _
  %s16 = ssub.s32 1, %s14
  %s17 = scalar_select 0, %s16, %s14
  $region1: #{tpu_custom_call.1} parent=0
    #allocation6 [shape = 'u8[16384]{0}', space=vmem, size = 0x4000, scoped, tag = 'input window, operand 0']
    #allocation7 [shape = 's32[2]{0}', space=sflag, size = 0x8, scoped, tag = 'scoped memory for tpu_custom_call.1']
    #allocation8 [shape = 's32[2]{0}', space=sflag, size = 0x8, scoped, tag = 'scoped memory for tpu_custom_call.1']
    #allocation9 [shape = 'u8[16384]{0}', space=vmem, size = 0x4000, scoped, tag = 'input window, operand 1']
    #allocation10 [shape = 's32[2]{0}', space=sflag, size = 0x8, scoped, tag = 'scoped memory for tpu_custom_call.1']
    #allocation11 [shape = 'u8[24576]{0}', space=vmem, size = 0x6000, scoped, tag = 'input window, operand 3, single buffered']
    #allocation12 [shape = 'u8[98304]{0}', space=vmem, size = 0x18000, scoped, tag = 'input window, operand 5, single buffered']
    #allocation13 [shape = 's32[1]{0}', space=sflag, size = 0x4, scoped, tag = 'scoped memory for tpu_custom_call.1']
    #allocation14 [shape = 'u8[24576]{0}', space=vmem, size = 0x6000, scoped, tag = 'input window, operand 7, single buffered']
    #allocation15 [shape = 'u8[98304]{0}', space=vmem, size = 0x18000, scoped, tag = 'input window, operand 9, single buffered']
    #allocation16 [shape = 's32[1]{0}', space=sflag, size = 0x4, scoped, tag = 'scoped memory for tpu_custom_call.1']
    #allocation17 [shape = 'u8[65536]{0}', space=vmem, size = 0x10000, scoped, tag = 'input window, operand 11, single buffered']
    #allocation18 [shape = 'u8[4096]{0}', space=vmem, size = 0x1000, scoped, tag = 'output window, operand 0, single buffered']
    %18 = vsyncpa [#allocation7], 0
    %s19 = scalar_lea.sflag [#allocation7], 1
    %20 = vsyncpa %s19, 0
    %21 = vsyncpa [#allocation10], 0
    %s22 = scalar_lea.sflag [#allocation10], 1
    %23 = vsyncpa %s22, 0
    %24 = vsyncpa [#allocation13], 0
    %25 = vsyncpa [#allocation16], 0
    %26 = vsyncpa [#allocation8], 0
    loop: start=0, step=1, limit=4
    $region2: #{tpu_custom_call.1} parent=1 // loop_pre_header
      _
    $region3: #{tpu_custom_call.1} parent=1 // loop_header
      %s28 = sphi 0, %s32
      %p29 = scmp.ge.s32.totalorder %s28, 4
      %s35 = sphi 0, %s47
      %s36 = sphi 0, %s43
      %s37 = sphi 0, %s35
      %s38 = sphi 0, %s36
      %s39 = sphi 0, %s37
      %s40 = sphi 0, %s38
      %s52 = sphi 0, %s54
      %s55 = sphi 0, %s52
      %s56 = sphi 0, %s55
      %s72 = sphi 0, %s56
      %s82 = sphi 0, %s84
      %s85 = sphi 0, %s82
      %s86 = sphi 0, %s85
      %s102 = sphi 0, %s86
      %s108 = sphi 0, %s110
      %s111 = sphi 0, %s108
      %s112 = sphi 0, %s111
      %s128 = sphi 0, %s112
      %s132 = sphi 0, %s132
      %s134 = sphi 0, %s132
      %s135 = sphi 0, %s134
      %s149 = sphi 0, %s135
      %s153 = sphi 0, %s153
      %s155 = sphi 0, %s153
      %s156 = sphi 0, %s155
      %s170 = sphi 0, %s156
      %s174 = sphi 0, %s174
      %s176 = sphi 0, %s174
      %s177 = sphi 0, %s176
      %s191 = sphi 0, %s177
      %s195 = sphi 0, %s195
      %s197 = sphi 0, %s195
      %s198 = sphi 0, %s197
      %s212 = sphi 0, %s198
      %s216 = sphi 0, %s216
      %s218 = sphi 0, %s216
      %s219 = sphi 0, %s218
      %s233 = sphi 0, %s219
      %s237 = sphi 0, %s237
      %s239 = sphi 0, %s237
      %s240 = sphi 0, %s239
      %s254 = sphi 0, %s240
      %s258 = sphi 0, %s258
      %s260 = sphi 0, %s258
      %s261 = sphi 0, %s260
      %s275 = sphi 0, %s261
      %s279 = sphi 0, %s279
      %s281 = sphi 0, %s279
      %s282 = sphi 0, %s281
      %s296 = sphi 0, %s282
      %s300 = sphi 0, %s300
      %s302 = sphi 0, %s300
      %s303 = sphi 0, %s302
      %s317 = sphi 0, %s303
      %s321 = sphi 0, %s321
      %s323 = sphi 0, %s321
      %s324 = sphi 0, %s323
      %s338 = sphi 0, %s324
      %s344 = sphi 0, %s346
      %s347 = sphi 0, %s344
      %s348 = sphi 0, %s347
      %s364 = sphi 0, %s348
    $region4: #{tpu_custom_call.1} parent=1 // loop_header_branch
      %31 = sbr.rel (%p29) target = $region8
    $region5: #{tpu_custom_call.1} parent=1 // loop_body
      %s33 = ssub.s32 %s28, 1
      %s34 = ssub.s32 %s28, 2
      %s41 = sadd.s32 1, %s36
      %p42 = scmp.ge.s32.totalorder %s41, 2
      %s43 = scalar_select %p42, 0, %s41
      %s44 = sadd.s32 1, %s35
      %s45 = scalar_select %p42, %s44, %s35
      %p46 = scmp.ge.s32.totalorder %s45, 1
      %s47 = scalar_select %p46, 0, %s45
      %s48 = ssub.s32 %s36, %s43
      %s49 = ssub.s32 %s35, %s47
      %s50 = sor.u32 %s48, %s49
      %p51 = scmp.eq.s32.totalorder %s50, 0
      %s53 = sadd.s32 %s52, 1
      %s54 = scalar_select %p51, %s52, %s53
      %p57 = pneg %p51
      %p58 = scmp.eq.s32.totalorder %s28, 1
      %p59 = por %p57, %p58
      %p60 = scmp.ne.s32.totalorder %s52, %s55
      %p61 = scmp.eq.s32.totalorder %s28, 0
      %p62 = por %p60, %p61
      %p63 = scmp.ne.s32.totalorder %s52, %s55
      %p64 = scmp.eq.s32.totalorder %s33, 1
      %p65 = por %p63, %p64
      %p66 = scmp.ne.s32.totalorder %s55, %s56
      %p67 = scmp.eq.s32.totalorder %s33, 0
      %p68 = por %p66, %p67
      %p69 = scmp.ne.s32.totalorder %s55, %s56
      %p70 = scmp.eq.s32.totalorder %s34, 1
      %p71 = por %p69, %p70
      %p73 = scmp.ne.s32.totalorder %s56, %s72
      %p74 = scmp.eq.s32.totalorder %s34, 0
      %p75 = por %p73, %p74
      %s76 = ssub.s32 1, %s36
      %s77 = ssub.s32 1, %s43
      %s78 = ssub.s32 %s76, %s77
      %s79 = ssub.s32 %s35, %s47
      %s80 = sor.u32 %s78, %s79
      %p81 = scmp.eq.s32.totalorder %s80, 0
      %s83 = sadd.s32 %s82, 1
      %s84 = scalar_select %p81, %s82, %s83
      %p87 = pneg %p81
      %p88 = scmp.eq.s32.totalorder %s28, 1
      %p89 = por %p87, %p88
      %p90 = scmp.ne.s32.totalorder %s82, %s85
      %p91 = scmp.eq.s32.totalorder %s28, 0
      %p92 = por %p90, %p91
      %p93 = scmp.ne.s32.totalorder %s82, %s85
      %p94 = scmp.eq.s32.totalorder %s33, 1
      %p95 = por %p93, %p94
      %p96 = scmp.ne.s32.totalorder %s85, %s86
      %p97 = scmp.eq.s32.totalorder %s33, 0
      %p98 = por %p96, %p97
      %p99 = scmp.ne.s32.totalorder %s85, %s86
      %p100 = scmp.eq.s32.totalorder %s34, 1
      %p101 = por %p99, %p100
      %p103 = scmp.ne.s32.totalorder %s86, %s102
      %p104 = scmp.eq.s32.totalorder %s34, 0
      %p105 = por %p103, %p104
      %s106 = ssub.s32 %s35, %s47
      %p107 = scmp.eq.s32.totalorder %s106, 0
      %s109 = sadd.s32 %s108, 1
      %s110 = scalar_select %p107, %s108, %s109
      %p113 = pneg %p107
      %p114 = scmp.eq.s32.totalorder %s28, 1
      %p115 = por %p113, %p114
      %p116 = scmp.ne.s32.totalorder %s108, %s111
      %p117 = scmp.eq.s32.totalorder %s28, 0
      %p118 = por %p116, %p117
      %p119 = scmp.ne.s32.totalorder %s108, %s111
      %p120 = scmp.eq.s32.totalorder %s33, 1
      %p121 = por %p119, %p120
      %p122 = scmp.ne.s32.totalorder %s111, %s112
      %p123 = scmp.eq.s32.totalorder %s33, 0
      %p124 = por %p122, %p123
      %p125 = scmp.ne.s32.totalorder %s111, %s112
      %p126 = scmp.eq.s32.totalorder %s34, 1
      %p127 = por %p125, %p126
      %p129 = scmp.ne.s32.totalorder %s112, %s128
      %p130 = scmp.eq.s32.totalorder %s34, 0
      %p131 = por %p129, %p130
      %s133 = sadd.s32 %s132, 1
      %p136 = scmp.eq.s32.totalorder %s28, 1
      %p137 = scmp.ne.s32.totalorder %s132, %s134
      %p138 = scmp.eq.s32.totalorder %s28, 0
      %p139 = por %p137, %p138
      %p140 = scmp.ne.s32.totalorder %s132, %s134
      %p141 = scmp.eq.s32.totalorder %s33, 1
      %p142 = por %p140, %p141
      %p143 = scmp.ne.s32.totalorder %s134, %s135
      %p144 = scmp.eq.s32.totalorder %s33, 0
      %p145 = por %p143, %p144
      %p146 = scmp.ne.s32.totalorder %s134, %s135
      %p147 = scmp.eq.s32.totalorder %s34, 1
      %p148 = por %p146, %p147
      %p150 = scmp.ne.s32.totalorder %s135, %s149
      %p151 = scmp.eq.s32.totalorder %s34, 0
      %p152 = por %p150, %p151
      %s154 = sadd.s32 %s153, 1
      %p157 = scmp.eq.s32.totalorder %s28, 1
      %p158 = scmp.ne.s32.totalorder %s153, %s155
      %p159 = scmp.eq.s32.totalorder %s28, 0
      %p160 = por %p158, %p159
      %p161 = scmp.ne.s32.totalorder %s153, %s155
      %p162 = scmp.eq.s32.totalorder %s33, 1
      %p163 = por %p161, %p162
      %p164 = scmp.ne.s32.totalorder %s155, %s156
      %p165 = scmp.eq.s32.totalorder %s33, 0
      %p166 = por %p164, %p165
      %p167 = scmp.ne.s32.totalorder %s155, %s156
      %p168 = scmp.eq.s32.totalorder %s34, 1
      %p169 = por %p167, %p168
      %p171 = scmp.ne.s32.totalorder %s156, %s170
      %p172 = scmp.eq.s32.totalorder %s34, 0
      %p173 = por %p171, %p172
      %s175 = sadd.s32 %s174, 1
      %p178 = scmp.eq.s32.totalorder %s28, 1
      %p179 = scmp.ne.s32.totalorder %s174, %s176
      %p180 = scmp.eq.s32.totalorder %s28, 0
      %p181 = por %p179, %p180
      %p182 = scmp.ne.s32.totalorder %s174, %s176
      %p183 = scmp.eq.s32.totalorder %s33, 1
      %p184 = por %p182, %p183
      %p185 = scmp.ne.s32.totalorder %s176, %s177
      %p186 = scmp.eq.s32.totalorder %s33, 0
      %p187 = por %p185, %p186
      %p188 = scmp.ne.s32.totalorder %s176, %s177
      %p189 = scmp.eq.s32.totalorder %s34, 1
      %p190 = por %p188, %p189
      %p192 = scmp.ne.s32.totalorder %s177, %s191
      %p193 = scmp.eq.s32.totalorder %s34, 0
      %p194 = por %p192, %p193
      %s196 = sadd.s32 %s195, 1
      %p199 = scmp.eq.s32.totalorder %s28, 1
      %p200 = scmp.ne.s32.totalorder %s195, %s197
      %p201 = scmp.eq.s32.totalorder %s28, 0
      %p202 = por %p200, %p201
      %p203 = scmp.ne.s32.totalorder %s195, %s197
      %p204 = scmp.eq.s32.totalorder %s33, 1
      %p205 = por %p203, %p204
      %p206 = scmp.ne.s32.totalorder %s197, %s198
      %p207 = scmp.eq.s32.totalorder %s33, 0
      %p208 = por %p206, %p207
      %p209 = scmp.ne.s32.totalorder %s197, %s198
      %p210 = scmp.eq.s32.totalorder %s34, 1
      %p211 = por %p209, %p210
      %p213 = scmp.ne.s32.totalorder %s198, %s212
      %p214 = scmp.eq.s32.totalorder %s34, 0
      %p215 = por %p213, %p214
      %s217 = sadd.s32 %s216, 1
      %p220 = scmp.eq.s32.totalorder %s28, 1
      %p221 = scmp.ne.s32.totalorder %s216, %s218
      %p222 = scmp.eq.s32.totalorder %s28, 0
      %p223 = por %p221, %p222
      %p224 = scmp.ne.s32.totalorder %s216, %s218
      %p225 = scmp.eq.s32.totalorder %s33, 1
      %p226 = por %p224, %p225
      %p227 = scmp.ne.s32.totalorder %s218, %s219
      %p228 = scmp.eq.s32.totalorder %s33, 0
      %p229 = por %p227, %p228
      %p230 = scmp.ne.s32.totalorder %s218, %s219
      %p231 = scmp.eq.s32.totalorder %s34, 1
      %p232 = por %p230, %p231
      %p234 = scmp.ne.s32.totalorder %s219, %s233
      %p235 = scmp.eq.s32.totalorder %s34, 0
      %p236 = por %p234, %p235
      %s238 = sadd.s32 %s237, 1
      %p241 = scmp.eq.s32.totalorder %s28, 1
      %p242 = scmp.ne.s32.totalorder %s237, %s239
      %p243 = scmp.eq.s32.totalorder %s28, 0
      %p244 = por %p242, %p243
      %p245 = scmp.ne.s32.totalorder %s237, %s239
      %p246 = scmp.eq.s32.totalorder %s33, 1
      %p247 = por %p245, %p246
      %p248 = scmp.ne.s32.totalorder %s239, %s240
      %p249 = scmp.eq.s32.totalorder %s33, 0
      %p250 = por %p248, %p249
      %p251 = scmp.ne.s32.totalorder %s239, %s240
      %p252 = scmp.eq.s32.totalorder %s34, 1
      %p253 = por %p251, %p252
      %p255 = scmp.ne.s32.totalorder %s240, %s254
      %p256 = scmp.eq.s32.totalorder %s34, 0
      %p257 = por %p255, %p256
      %s259 = sadd.s32 %s258, 1
      %p262 = scmp.eq.s32.totalorder %s28, 1
      %p263 = scmp.ne.s32.totalorder %s258, %s260
      %p264 = scmp.eq.s32.totalorder %s28, 0
      %p265 = por %p263, %p264
      %p266 = scmp.ne.s32.totalorder %s258, %s260
      %p267 = scmp.eq.s32.totalorder %s33, 1
      %p268 = por %p266, %p267
      %p269 = scmp.ne.s32.totalorder %s260, %s261
      %p270 = scmp.eq.s32.totalorder %s33, 0
      %p271 = por %p269, %p270
      %p272 = scmp.ne.s32.totalorder %s260, %s261
      %p273 = scmp.eq.s32.totalorder %s34, 1
      %p274 = por %p272, %p273
      %p276 = scmp.ne.s32.totalorder %s261, %s275
      %p277 = scmp.eq.s32.totalorder %s34, 0
      %p278 = por %p276, %p277
      %s280 = sadd.s32 %s279, 1
      %p283 = scmp.eq.s32.totalorder %s28, 1
      %p284 = scmp.ne.s32.totalorder %s279, %s281
      %p285 = scmp.eq.s32.totalorder %s28, 0
      %p286 = por %p284, %p285
      %p287 = scmp.ne.s32.totalorder %s279, %s281
      %p288 = scmp.eq.s32.totalorder %s33, 1
      %p289 = por %p287, %p288
      %p290 = scmp.ne.s32.totalorder %s281, %s282
      %p291 = scmp.eq.s32.totalorder %s33, 0
      %p292 = por %p290, %p291
      %p293 = scmp.ne.s32.totalorder %s281, %s282
      %p294 = scmp.eq.s32.totalorder %s34, 1
      %p295 = por %p293, %p294
      %p297 = scmp.ne.s32.totalorder %s282, %s296
      %p298 = scmp.eq.s32.totalorder %s34, 0
      %p299 = por %p297, %p298
      %s301 = sadd.s32 %s300, 1
      %p304 = scmp.eq.s32.totalorder %s28, 1
      %p305 = scmp.ne.s32.totalorder %s300, %s302
      %p306 = scmp.eq.s32.totalorder %s28, 0
      %p307 = por %p305, %p306
      %p308 = scmp.ne.s32.totalorder %s300, %s302
      %p309 = scmp.eq.s32.totalorder %s33, 1
      %p310 = por %p308, %p309
      %p311 = scmp.ne.s32.totalorder %s302, %s303
      %p312 = scmp.eq.s32.totalorder %s33, 0
      %p313 = por %p311, %p312
      %p314 = scmp.ne.s32.totalorder %s302, %s303
      %p315 = scmp.eq.s32.totalorder %s34, 1
      %p316 = por %p314, %p315
      %p318 = scmp.ne.s32.totalorder %s303, %s317
      %p319 = scmp.eq.s32.totalorder %s34, 0
      %p320 = por %p318, %p319
      %s322 = sadd.s32 %s321, 1
      %p325 = scmp.eq.s32.totalorder %s28, 1
      %p326 = scmp.ne.s32.totalorder %s321, %s323
      %p327 = scmp.eq.s32.totalorder %s28, 0
      %p328 = por %p326, %p327
      %p329 = scmp.ne.s32.totalorder %s321, %s323
      %p330 = scmp.eq.s32.totalorder %s33, 1
      %p331 = por %p329, %p330
      %p332 = scmp.ne.s32.totalorder %s323, %s324
      %p333 = scmp.eq.s32.totalorder %s33, 0
      %p334 = por %p332, %p333
      %p335 = scmp.ne.s32.totalorder %s323, %s324
      %p336 = scmp.eq.s32.totalorder %s34, 1
      %p337 = por %p335, %p336
      %p339 = scmp.ne.s32.totalorder %s324, %s338
      %p340 = scmp.eq.s32.totalorder %s34, 0
      %p341 = por %p339, %p340
      %s342 = ssub.s32 %s35, %s47
      %p343 = scmp.eq.s32.totalorder %s342, 0
      %s345 = sadd.s32 %s344, 1
      %s346 = scalar_select %p343, %s344, %s345
      %p349 = pneg %p343
      %p350 = scmp.eq.s32.totalorder %s28, 1
      %p351 = por %p349, %p350
      %p352 = scmp.ne.s32.totalorder %s344, %s347
      %p353 = scmp.eq.s32.totalorder %s28, 0
      %p354 = por %p352, %p353
      %p355 = scmp.ne.s32.totalorder %s344, %s347
      %p356 = scmp.eq.s32.totalorder %s33, 1
      %p357 = por %p355, %p356
      %p358 = scmp.ne.s32.totalorder %s347, %s348
      %p359 = scmp.eq.s32.totalorder %s33, 0
      %p360 = por %p358, %p359
      %p361 = scmp.ne.s32.totalorder %s347, %s348
      %p362 = scmp.eq.s32.totalorder %s34, 1
      %p363 = por %p361, %p362
      %p365 = scmp.ne.s32.totalorder %s348, %s364
      %p366 = scmp.eq.s32.totalorder %s34, 0
      %p367 = por %p365, %p366
      %p368 = scmp.le.s32.totalorder 1, %s28
      %p369 = scmp.lt.s32.totalorder %s28, 3
      %p370 = pnand %p368, %p369
      %p371 = pneg %p370
      // Predicated region
      $region9: #{tpu_custom_call.1} parent=5 // pred_check
        _
      $region10: #{tpu_custom_call.1} parent=5 // pred_check_branch
        %373 = sbr.rel (%p370) target = $region12
      $region11: #{tpu_custom_call.1} parent=5 // pred_region
        %s374 = ssub.s32 %s28, 1
        // Predicated region
        $region13: #{tpu_custom_call.1} parent=11 // pred_check
          %p375 = pneg %p124
        $region14: #{tpu_custom_call.1} parent=11 // pred_check_branch
          %377 = sbr.rel (%p375) target = $region16
        $region15: #{tpu_custom_call.1} parent=11 // pred_region
          %p378 = scmp.lt.s32.totalorder %s37, 0
          %s379 = scalar_select %p378, %s37, 0
          %s380 = smul.addr %s379, 8
          %s381 = scalar_lea.vmem %s2, %s380
        $region16: #{tpu_custom_call.1} parent=11 // pred_fallthru
          _
        // Predicated region
        $region17: #{tpu_custom_call.1} parent=11 // pred_check
          %p382 = pneg %p145
        $region18: #{tpu_custom_call.1} parent=11 // pred_check_branch
          %384 = sbr.rel (%p382) target = $region20
        $region19: #{tpu_custom_call.1} parent=11 // pred_region
          %386 = vsyncadd [#allocation10], 0
          %s387 = sshll.u32 %s3, 4
          %s388 = int_to_ptr.hbm [resolvable:$true] %s387
          %s389 = sshll.u32 [#allocation11], 4
          %s390 = int_to_ptr.vmem [resolvable:$true] %s389
          %395 = dma.hbm_to_vmem [thread:$0]  %s388, 768, %s390, [#allocation10], 192, 192, 12
        $region20: #{tpu_custom_call.1} parent=11 // pred_fallthru
          _
        // Predicated region
        $region21: #{tpu_custom_call.1} parent=11 // pred_check
          %p396 = pneg %p166
        $region22: #{tpu_custom_call.1} parent=11 // pred_check_branch
          %398 = sbr.rel (%p396) target = $region24
        $region23: #{tpu_custom_call.1} parent=11 // pred_region
          _
        $region24: #{tpu_custom_call.1} parent=11 // pred_fallthru
          _
        // Predicated region
        $region25: #{tpu_custom_call.1} parent=11 // pred_check
          %p399 = pneg %p187
        $region26: #{tpu_custom_call.1} parent=11 // pred_check_branch
          %401 = sbr.rel (%p399) target = $region28
        $region27: #{tpu_custom_call.1} parent=11 // pred_region
          %403 = vsyncadd [#allocation13], 0
          %s404 = sshll.u32 %s5, 4
          %s405 = int_to_ptr.hbm [resolvable:$true] %s404
          %s406 = sshll.u32 [#allocation12], 4
          %s407 = int_to_ptr.vmem [resolvable:$true] %s406
          %412 = dma.hbm_to_vmem [thread:$0]  %s405, 3072, %s407, [#allocation13], 192, 192, 12
        $region28: #{tpu_custom_call.1} parent=11 // pred_fallthru
          _
        // Predicated region
        $region29: #{tpu_custom_call.1} parent=11 // pred_check
          %p413 = pneg %p208
        $region30: #{tpu_custom_call.1} parent=11 // pred_check_branch
          %415 = sbr.rel (%p413) target = $region32
        $region31: #{tpu_custom_call.1} parent=11 // pred_region
          _
        $region32: #{tpu_custom_call.1} parent=11 // pred_fallthru
          _
        // Predicated region
        $region33: #{tpu_custom_call.1} parent=11 // pred_check
          %p416 = pneg %p229
        $region34: #{tpu_custom_call.1} parent=11 // pred_check_branch
          %418 = sbr.rel (%p416) target = $region36
        $region35: #{tpu_custom_call.1} parent=11 // pred_region
          %420 = vsyncadd [#allocation13], 0
          %s421 = sshll.u32 %s7, 4
          %s422 = int_to_ptr.hbm [resolvable:$true] %s421
          %s423 = sshll.u32 [#allocation14], 4
          %s424 = int_to_ptr.vmem [resolvable:$true] %s423
          %429 = dma.hbm_to_vmem [thread:$0]  %s422, 768, %s424, [#allocation13], 192, 192, 12
        $region36: #{tpu_custom_call.1} parent=11 // pred_fallthru
          _
        // Predicated region
        $region37: #{tpu_custom_call.1} parent=11 // pred_check
          %p430 = pneg %p250
        $region38: #{tpu_custom_call.1} parent=11 // pred_check_branch
          %432 = sbr.rel (%p430) target = $region40
        $region39: #{tpu_custom_call.1} parent=11 // pred_region
          _
        $region40: #{tpu_custom_call.1} parent=11 // pred_fallthru
          _
        // Predicated region
        $region41: #{tpu_custom_call.1} parent=11 // pred_check
          %p433 = pneg %p271
        $region42: #{tpu_custom_call.1} parent=11 // pred_check_branch
          %435 = sbr.rel (%p433) target = $region44
        $region43: #{tpu_custom_call.1} parent=11 // pred_region
          %437 = vsyncadd [#allocation16], 0
          %s438 = sshll.u32 %s9, 4
          %s439 = int_to_ptr.hbm [resolvable:$true] %s438
          %s440 = sshll.u32 [#allocation15], 4
          %s441 = int_to_ptr.vmem [resolvable:$true] %s440
          %446 = dma.hbm_to_vmem [thread:$0]  %s439, 3072, %s441, [#allocation16], 192, 192, 12
        $region44: #{tpu_custom_call.1} parent=11 // pred_fallthru
          _
        // Predicated region
        $region45: #{tpu_custom_call.1} parent=11 // pred_check
          %p447 = pneg %p292
        $region46: #{tpu_custom_call.1} parent=11 // pred_check_branch
          %449 = sbr.rel (%p447) target = $region48
        $region47: #{tpu_custom_call.1} parent=11 // pred_region
          _
        $region48: #{tpu_custom_call.1} parent=11 // pred_fallthru
          _
        // Predicated region
        $region49: #{tpu_custom_call.1} parent=11 // pred_check
          %p450 = pneg %p313
        $region50: #{tpu_custom_call.1} parent=11 // pred_check_branch
          %452 = sbr.rel (%p450) target = $region52
        $region51: #{tpu_custom_call.1} parent=11 // pred_region
          %454 = vsyncadd [#allocation16], 0
          %s455 = sshll.u32 %s11, 4
          %s456 = int_to_ptr.hbm [resolvable:$true] %s455
          %s457 = sshll.u32 [#allocation17], 4
          %s458 = int_to_ptr.vmem [resolvable:$true] %s457
          %463 = dma.hbm_to_vmem [thread:$0]  %s456, 2048, %s458, [#allocation16], 64, 64, 4
        $region52: #{tpu_custom_call.1} parent=11 // pred_fallthru
          _
        // Predicated region
        $region53: #{tpu_custom_call.1} parent=11 // pred_check
          %p464 = pneg %p334
        $region54: #{tpu_custom_call.1} parent=11 // pred_check_branch
          %466 = sbr.rel (%p464) target = $region56
        $region55: #{tpu_custom_call.1} parent=11 // pred_region
          _
        $region56: #{tpu_custom_call.1} parent=11 // pred_fallthru
          _
      $region12: #{tpu_custom_call.1} parent=5 // pred_fallthru
        _
      %p467 = scmp.lt.s32.totalorder %s28, 2
      // Predicated region
      $region57: #{tpu_custom_call.1} parent=5 // pred_check
        %p468 = pneg %p467
      $region58: #{tpu_custom_call.1} parent=5 // pred_check_branch
        %470 = sbr.rel (%p468) target = $region60
      $region59: #{tpu_custom_call.1} parent=5 // pred_region
        // Predicated region
        $region61: #{tpu_custom_call.1} parent=59 // pred_check
          %p471 = pneg %p62
        $region62: #{tpu_custom_call.1} parent=59 // pred_check_branch
          %473 = sbr.rel (%p471) target = $region64
        $region63: #{tpu_custom_call.1} parent=59 // pred_region
          %s474 = sand.u32 %s52, 1
          %s475 = scalar_lea.sflag [#allocation7], %s474
          %s476 = sand.u32 %s52, 1
          %s477 = smul.addr %s476, 16
          %s478 = scalar_lea.vmem [#allocation6], %s477
          %s479 = smul.u32 4, %s36
          %481 = vsyncadd %s475, 0
          %s482 = sadd.s32 %s35, %s479
          %s483 = smul.addr %s482, 4
          %s484 = scalar_lea.hbm %s0, %s483
          %s485 = sshll.u32 %s484, 4
          %s486 = int_to_ptr.hbm [resolvable:$true] %s485
          %s487 = sshll.u32 %s478, 4
          %s488 = int_to_ptr.vmem [resolvable:$true] %s487
          %493 = dma.hbm_to_vmem [thread:$0]  %s486, 256, %s488, %s475, 64, 64, 4
        $region64: #{tpu_custom_call.1} parent=59 // pred_fallthru
          _
        // Predicated region
        $region65: #{tpu_custom_call.1} parent=59 // pred_check
          %p494 = pneg %p92
        $region66: #{tpu_custom_call.1} parent=59 // pred_check_branch
          %496 = sbr.rel (%p494) target = $region68
        $region67: #{tpu_custom_call.1} parent=59 // pred_region
          %s497 = sand.u32 %s28, 1
          %s498 = scalar_lea.sflag [#allocation10], %s497
          %s499 = sand.u32 %s82, 1
          %s500 = smul.addr %s499, 16
          %s501 = scalar_lea.vmem [#allocation9], %s500
          %s502 = ssub.s32 1, %s36
          %s503 = smul.u32 4, %s502
          %505 = vsyncadd %s498, 0
          %s506 = sadd.s32 %s35, %s503
          %s507 = smul.addr %s506, 4
          %s508 = scalar_lea.hbm %s1, %s507
          %s509 = sshll.u32 %s508, 4
          %s510 = int_to_ptr.hbm [resolvable:$true] %s509
          %s511 = sshll.u32 %s501, 4
          %s512 = int_to_ptr.vmem [resolvable:$true] %s511
          %517 = dma.hbm_to_vmem [thread:$0]  %s510, 256, %s512, %s498, 64, 64, 4
        $region68: #{tpu_custom_call.1} parent=59 // pred_fallthru
          _
      $region60: #{tpu_custom_call.1} parent=5 // pred_fallthru
        _
      %p518 = scmp.le.s32.totalorder 1, %s28
      %p519 = scmp.lt.s32.totalorder %s28, 3
      %p520 = pnand %p518, %p519
      %p521 = pneg %p520
      // Predicated region
      $region69: #{tpu_custom_call.1} parent=5 // pred_check
        _
      $region70: #{tpu_custom_call.1} parent=5 // pred_check_branch
        %523 = sbr.rel (%p520) target = $region72
      $region71: #{tpu_custom_call.1} parent=5 // pred_region
        %s524 = ssub.s32 %s28, 1
        %s525 = sand.u32 %s55, 1
        %s526 = scalar_lea.sflag [#allocation7], %s525
        %s527 = sand.u32 %s55, 1
        %s528 = smul.addr %s527, 16
        %s529 = scalar_lea.vmem [#allocation6], %s528
        // Predicated region
        $region73: #{tpu_custom_call.1} parent=71 // pred_check
          %p530 = pneg %p68
        $region74: #{tpu_custom_call.1} parent=71 // pred_check_branch
          %532 = sbr.rel (%p530) target = $region76
        $region75: #{tpu_custom_call.1} parent=71 // pred_region
          %534 = dma.done %s526, 256
        $region76: #{tpu_custom_call.1} parent=71 // pred_fallthru
          _
        %s535 = sand.u32 %s33, 1
        %s536 = scalar_lea.sflag [#allocation10], %s535
        %s537 = sand.u32 %s85, 1
        %s538 = smul.addr %s537, 16
        %s539 = scalar_lea.vmem [#allocation9], %s538
        // Predicated region
        $region77: #{tpu_custom_call.1} parent=71 // pred_check
          %p540 = pneg %p98
        $region78: #{tpu_custom_call.1} parent=71 // pred_check_branch
          %542 = sbr.rel (%p540) target = $region80
        $region79: #{tpu_custom_call.1} parent=71 // pred_region
          %544 = dma.done %s536, 256
        $region80: #{tpu_custom_call.1} parent=71 // pred_fallthru
          _
        // Predicated region
        $region81: #{tpu_custom_call.1} parent=71 // pred_check
          %p545 = pneg %p145
        $region82: #{tpu_custom_call.1} parent=71 // pred_check_branch
          %547 = sbr.rel (%p545) target = $region84
        $region83: #{tpu_custom_call.1} parent=71 // pred_region
          %549 = dma.done [#allocation10], 768
        $region84: #{tpu_custom_call.1} parent=71 // pred_fallthru
          _
        // Predicated region
        $region85: #{tpu_custom_call.1} parent=71 // pred_check
          %p550 = pneg %p187
        $region86: #{tpu_custom_call.1} parent=71 // pred_check_branch
          %552 = sbr.rel (%p550) target = $region88
        $region87: #{tpu_custom_call.1} parent=71 // pred_region
          %554 = dma.done [#allocation13], 3072
        $region88: #{tpu_custom_call.1} parent=71 // pred_fallthru
          _
        // Predicated region
        $region89: #{tpu_custom_call.1} parent=71 // pred_check
          %p555 = pneg %p229
        $region90: #{tpu_custom_call.1} parent=71 // pred_check_branch
          %557 = sbr.rel (%p555) target = $region92
        $region91: #{tpu_custom_call.1} parent=71 // pred_region
          %559 = dma.done [#allocation13], 768
        $region92: #{tpu_custom_call.1} parent=71 // pred_fallthru
          _
        // Predicated region
        $region93: #{tpu_custom_call.1} parent=71 // pred_check
          %p560 = pneg %p271
        $region94: #{tpu_custom_call.1} parent=71 // pred_check_branch
          %562 = sbr.rel (%p560) target = $region96
        $region95: #{tpu_custom_call.1} parent=71 // pred_region
          %564 = dma.done [#allocation16], 3072
        $region96: #{tpu_custom_call.1} parent=71 // pred_fallthru
          _
        // Predicated region
        $region97: #{tpu_custom_call.1} parent=71 // pred_check
          %p565 = pneg %p313
        $region98: #{tpu_custom_call.1} parent=71 // pred_check_branch
          %567 = sbr.rel (%p565) target = $region100
        $region99: #{tpu_custom_call.1} parent=71 // pred_region
          %569 = dma.done [#allocation16], 2048
        $region100: #{tpu_custom_call.1} parent=71 // pred_fallthru
          _
        %s570 = sand.u32 %s55, 1
        %s571 = scalar_lea.sflag [#allocation7], %s570
        %s572 = sand.u32 %s55, 1
        %s573 = smul.addr %s572, 16
        %s574 = scalar_lea.vmem [#allocation6], %s573
        %p575 = pneg %p68
        %p576 = pneg %p65
        %s577 = sand.u32 %s33, 1
        %s578 = scalar_lea.sflag [#allocation10], %s577
        %s579 = sand.u32 %s85, 1
        %s580 = smul.addr %s579, 16
        %s581 = scalar_lea.vmem [#allocation9], %s580
        %p582 = pneg %p98
        %p583 = pneg %p95
        %p584 = scmp.lt.s32.totalorder %s37, 0
        %s585 = scalar_select %p584, %s37, 0
        %s586 = smul.addr %s585, 8
        %s587 = scalar_lea.vmem %s2, %s586
        %p588 = pneg %p124
        %p589 = pneg %p121
        %p590 = pneg %p145
        %p591 = pneg %p142
        %p592 = pneg %p166
        %p593 = pneg %p163
        %p594 = pneg %p187
        %p595 = pneg %p184
        %p596 = pneg %p208
        %p597 = pneg %p205
        %p598 = pneg %p229
        %p599 = pneg %p226
        %p600 = pneg %p250
        %p601 = pneg %p247
        %p602 = pneg %p271
        %p603 = pneg %p268
        %p604 = pneg %p292
        %p605 = pneg %p289
        %p606 = pneg %p313
        %p607 = pneg %p310
        %p608 = pneg %p334
        %p609 = pneg %p331
        %p610 = pneg %p360
        %p611 = pneg %p357
        %s612 = smul.u32 4, %s38
        %s613 = ssub.s32 1, %s38
        %s614 = smul.u32 4, %s613
        %p615 = scmp.lt.s32.totalorder %s37, 0
        %s616 = scalar_select %p615, %s37, 0
        %s617 = smul.addr %s616, 8
        %s618 = scalar_lea.vmem %s2, %s617
        %p620 = scmp.eq.s32.totalorder %s38, 0
        // Predicated region
        $region101: #{tpu_custom_call.1} parent=71 // pred_check
          %p621 = pneg %p620
        $region102: #{tpu_custom_call.1} parent=71 // pred_check_branch
          %623 = sbr.rel (%p621) target = $region104
        $region103: #{tpu_custom_call.1} parent=71 // pred_region
          %624 = vst [vmem:[#allocation2] sm:$0xff] 0.0
          %625 = vst [vmem:[#allocation3] sm:$0xff] 0.0
        $region104: #{tpu_custom_call.1} parent=71 // pred_fallthru
          _
        %v626 = vld [vmem:[%s529] sm:$0xf]
        %v627 = vld [vmem:[%s529 + $0x4] sm:$0xf]
        %v628 = vld [vmem:[%s529 + $0x8] sm:$0xf]
        %v629 = vld [vmem:[%s529 + $0xc] sm:$0xf]
        %v630 = vld [vmem:[%s539] sm:$0xf]
        %v631 = vld [vmem:[%s539 + $0x4] sm:$0xf]
        %v632 = vld [vmem:[%s539 + $0x8] sm:$0xf]
        %v633 = vld [vmem:[%s539 + $0xc] sm:$0xf]
        %v634 = vld [vmem:[#allocation11] sm:$0xff]
        %v635 = vld [vmem:[#allocation11 + $0x8] sm:$0xf]
        %v636 = vld [vmem:[#allocation11 + $0xc] sm:$0xff]
        %v637 = vld [vmem:[#allocation11 + $0x14] sm:$0xf]
        %v638 = vld [vmem:[#allocation11 + $0x18] sm:$0xff]
        %v639 = vld [vmem:[#allocation11 + $0x20] sm:$0xf]
        %v640 = vld [vmem:[#allocation11 + $0x24] sm:$0xff]
        %v641 = vld [vmem:[#allocation11 + $0x2c] sm:$0xf]
        %v642 = vld [vmem:[%s4] sm:$0x7]
        %v644 = vperm.slane %v642, 0
        %v645 = vperm.slane %v642, 1
        %v646 = vperm.slane %v642, 2
        %v654 = vunpack.c.l.b16 %v626
        %v655 = vunpack.c.l.b16 %v627
        %v656 = vunpack.c.l.b16 %v628
        %v657 = vunpack.c.l.b16 %v629
        %v658 = vpack.c.b16 %v655, %v654
        %v659 = vpack.c.b16 %v657, %v656
        %v668 = vunpack.c.l.b16 %v634
        %v669 = vunpack.c.h.b16 %v634
        %v670 = vunpack.c.l.b16 %v635
        %v671 = vunpack.c.l.b16 %v636
        %v672 = vunpack.c.h.b16 %v636
        %v673 = vunpack.c.l.b16 %v637
        %v674 = vunpack.c.l.b16 %v638
        %v675 = vunpack.c.h.b16 %v638
        %v676 = vunpack.c.l.b16 %v639
        %v677 = vunpack.c.l.b16 %v640
        %v678 = vunpack.c.h.b16 %v640
        %v679 = vunpack.c.l.b16 %v641
        %v680 = vpack.c.b16 %v671, %v668
        %v681 = vpack.c.b16 %v672, %v669
        %v682 = vpack.c.b16 %v673, %v670
        %v683 = vpack.c.b16 %v677, %v674
        %v684 = vpack.c.b16 %v678, %v675
        %v685 = vpack.c.b16 %v679, %v676
        %vm692 = vcmask 261120
        %v694 = vsel %vm692, %v658, 0
        %v697 = vsel %vm692, %v659, 0
        %699 = vmatpush.bf16.msra.mxu0 0
        %700 = vmatpush.bf16.msra.mxu0 0
        %701 = vmatpush.bf16.msra.mxu0 0
        %702 = vmatpush.bf16.msra.mxu0 0
        %703 = vmatpush.bf16.msra.mxu0 0
        %704 = vmatpush.bf16.msra.mxu0 0
        %705 = vmatpush.bf16.msra.mxu0 %v683
        %706 = vmatpush.bf16.msra.mxu0 %v680
        %707 = vmatmul.bf16.gmra.mxu0 %v694
        %v708 = vpop.f32.mrf.mxu0
        %v709 = vadd.f32 %v644, %v708
        %v710 = vpop.f32.mrf.mxu0
        %v711 = vadd.f32 %v644, %v710
        %712 = vmatmul.bf16.gmra.mxu0 %v697
        %v713 = vpop.f32.mrf.mxu0
        %v714 = vadd.f32 %v644, %v713
        %v715 = vpop.f32.mrf.mxu0
        %v716 = vadd.f32 %v644, %v715
        %717 = vdwg.mxu0
        %718 = vmatpush.bf16.msra.mxu0 0
        %719 = vmatpush.bf16.msra.mxu0 0
        %720 = vmatpush.bf16.msra.mxu0 0
        %721 = vmatpush.bf16.msra.mxu0 0
        %722 = vmatpush.bf16.msra.mxu0 0
        %723 = vmatpush.bf16.msra.mxu0 0
        %724 = vmatpush.bf16.msra.mxu0 %v684
        %725 = vmatpush.bf16.msra.mxu0 %v681
        %726 = vmatmul.bf16.gmra.mxu0 %v694
        %v727 = vpop.f32.mrf.mxu0
        %v728 = vadd.f32 %v645, %v727
        %v729 = vpop.f32.mrf.mxu0
        %v730 = vadd.f32 %v645, %v729
        %731 = vmatmul.bf16.gmra.mxu0 %v697
        %v732 = vpop.f32.mrf.mxu0
        %v733 = vadd.f32 %v645, %v732
        %v734 = vpop.f32.mrf.mxu0
        %v735 = vadd.f32 %v645, %v734
        %736 = vdwg.mxu0
        %737 = vmatpush.bf16.msra.mxu0 0
        %738 = vmatpush.bf16.msra.mxu0 0
        %739 = vmatpush.bf16.msra.mxu0 0
        %740 = vmatpush.bf16.msra.mxu0 0
        %741 = vmatpush.bf16.msra.mxu0 0
        %742 = vmatpush.bf16.msra.mxu0 0
        %743 = vmatpush.bf16.msra.mxu0 %v685
        %744 = vmatpush.bf16.msra.mxu0 %v682
        %745 = vmatmul.bf16.gmra.mxu0 %v694
        %v746 = vpop.f32.mrf.mxu0
        %v747 = vadd.f32 %v646, %v746
        %v748 = vpop.f32.mrf.mxu0
        %v749 = vadd.f32 %v646, %v748
        %750 = vmatmul.bf16.gmra.mxu0 %v697
        %v751 = vpop.f32.mrf.mxu0
        %v752 = vadd.f32 %v646, %v751
        %v753 = vpop.f32.mrf.mxu0
        %v754 = vadd.f32 %v646, %v753
        %755 = vdwg.mxu0
        %v756 = vpack.c.bf16 %v728, %v709
        %v757 = vpack.c.bf16 %v747, %v747
        %v758 = vpack.c.bf16 %v730, %v711
        %v759 = vpack.c.bf16 %v749, %v749
        %v760 = vpack.c.bf16 %v733, %v714
        %v761 = vpack.c.bf16 %v752, %v752
        %v762 = vpack.c.bf16 %v735, %v716
        %v763 = vpack.c.bf16 %v754, %v754
        %764 = vst [vmem:[#allocation4] sm:$0xff] %v756
        %765 = vst [vmem:[#allocation4 + $0x8] sm:$0xf] %v757
        %766 = vst [vmem:[#allocation4 + $0xc] sm:$0xff] %v758
        %767 = vst [vmem:[#allocation4 + $0x14] sm:$0xf] %v759
        %768 = vst [vmem:[#allocation4 + $0x18] sm:$0xff] %v760
        %769 = vst [vmem:[#allocation4 + $0x20] sm:$0xf] %v761
        %770 = vst [vmem:[#allocation4 + $0x24] sm:$0xff] %v762
        %771 = vst [vmem:[#allocation4 + $0x2c] sm:$0xf] %v763
        %v772 = vld [vmem:[#allocation14] sm:$0xff]
        %v773 = vld [vmem:[#allocation14 + $0x8] sm:$0xf]
        %v774 = vld [vmem:[#allocation14 + $0xc] sm:$0xff]
        %v775 = vld [vmem:[#allocation14 + $0x14] sm:$0xf]
        %v776 = vld [vmem:[#allocation14 + $0x18] sm:$0xff]
        %v777 = vld [vmem:[#allocation14 + $0x20] sm:$0xf]
        %v778 = vld [vmem:[#allocation14 + $0x24] sm:$0xff]
        %v779 = vld [vmem:[#allocation14 + $0x2c] sm:$0xf]
        %v780 = vld [vmem:[%s8] sm:$0x7]
        %v782 = vperm.slane %v780, 0
        %v783 = vperm.slane %v780, 1
        %v784 = vperm.slane %v780, 2
        %v792 = vunpack.c.l.b16 %v630
        %v793 = vunpack.c.l.b16 %v631
        %v794 = vunpack.c.l.b16 %v632
        %v795 = vunpack.c.l.b16 %v633
        %v796 = vpack.c.b16 %v793, %v792
        %v797 = vpack.c.b16 %v795, %v794
        %v806 = vunpack.c.l.b16 %v772
        %v807 = vunpack.c.h.b16 %v772
        %v808 = vunpack.c.l.b16 %v773
        %v809 = vunpack.c.l.b16 %v774
        %v810 = vunpack.c.h.b16 %v774
        %v811 = vunpack.c.l.b16 %v775
        %v812 = vunpack.c.l.b16 %v776
        %v813 = vunpack.c.h.b16 %v776
        %v814 = vunpack.c.l.b16 %v777
        %v815 = vunpack.c.l.b16 %v778
        %v816 = vunpack.c.h.b16 %v778
        %v817 = vunpack.c.l.b16 %v779
        %v818 = vpack.c.b16 %v809, %v806
        %v819 = vpack.c.b16 %v810, %v807
        %v820 = vpack.c.b16 %v811, %v808
        %v821 = vpack.c.b16 %v815, %v812
        %v822 = vpack.c.b16 %v816, %v813
        %v823 = vpack.c.b16 %v817, %v814
        %v831 = vsel %vm692, %v796, 0
        %v834 = vsel %vm692, %v797, 0
        %836 = vmatpush.bf16.msra.mxu0 0
        %837 = vmatpush.bf16.msra.mxu0 0
        %838 = vmatpush.bf16.msra.mxu0 0
        %839 = vmatpush.bf16.msra.mxu0 0
        %840 = vmatpush.bf16.msra.mxu0 0
        %841 = vmatpush.bf16.msra.mxu0 0
        %842 = vmatpush.bf16.msra.mxu0 %v821
        %843 = vmatpush.bf16.msra.mxu0 %v818
        %844 = vmatmul.bf16.gmra.mxu0 %v831
        %v845 = vpop.f32.mrf.mxu0
        %v846 = vadd.f32 %v782, %v845
        %v847 = vpop.f32.mrf.mxu0
        %v848 = vadd.f32 %v782, %v847
        %849 = vmatmul.bf16.gmra.mxu0 %v834
        %v850 = vpop.f32.mrf.mxu0
        %v851 = vadd.f32 %v782, %v850
        %v852 = vpop.f32.mrf.mxu0
        %v853 = vadd.f32 %v782, %v852
        %854 = vdwg.mxu0
        %855 = vmatpush.bf16.msra.mxu0 0
        %856 = vmatpush.bf16.msra.mxu0 0
        %857 = vmatpush.bf16.msra.mxu0 0
        %858 = vmatpush.bf16.msra.mxu0 0
        %859 = vmatpush.bf16.msra.mxu0 0
        %860 = vmatpush.bf16.msra.mxu0 0
        %861 = vmatpush.bf16.msra.mxu0 %v822
        %862 = vmatpush.bf16.msra.mxu0 %v819
        %863 = vmatmul.bf16.gmra.mxu0 %v831
        %v864 = vpop.f32.mrf.mxu0
        %v865 = vadd.f32 %v783, %v864
        %v866 = vpop.f32.mrf.mxu0
        %v867 = vadd.f32 %v783, %v866
        %868 = vmatmul.bf16.gmra.mxu0 %v834
        %v869 = vpop.f32.mrf.mxu0
        %v870 = vadd.f32 %v783, %v869
        %v871 = vpop.f32.mrf.mxu0
        %v872 = vadd.f32 %v783, %v871
        %873 = vdwg.mxu0
        %874 = vmatpush.bf16.msra.mxu0 0
        %875 = vmatpush.bf16.msra.mxu0 0
        %876 = vmatpush.bf16.msra.mxu0 0
        %877 = vmatpush.bf16.msra.mxu0 0
        %878 = vmatpush.bf16.msra.mxu0 0
        %879 = vmatpush.bf16.msra.mxu0 0
        %880 = vmatpush.bf16.msra.mxu0 %v823
        %881 = vmatpush.bf16.msra.mxu0 %v820
        %882 = vmatmul.bf16.gmra.mxu0 %v831
        %v883 = vpop.f32.mrf.mxu0
        %v884 = vadd.f32 %v784, %v883
        %v885 = vpop.f32.mrf.mxu0
        %v886 = vadd.f32 %v784, %v885
        %887 = vmatmul.bf16.gmra.mxu0 %v834
        %v888 = vpop.f32.mrf.mxu0
        %v889 = vadd.f32 %v784, %v888
        %v890 = vpop.f32.mrf.mxu0
        %v891 = vadd.f32 %v784, %v890
        %892 = vdwg.mxu0
        %v893 = vpack.c.bf16 %v865, %v846
        %v894 = vpack.c.bf16 %v884, %v884
        %v895 = vpack.c.bf16 %v867, %v848
        %v896 = vpack.c.bf16 %v886, %v886
        %v897 = vpack.c.bf16 %v870, %v851
        %v898 = vpack.c.bf16 %v889, %v889
        %v899 = vpack.c.bf16 %v872, %v853
        %v900 = vpack.c.bf16 %v891, %v891
        %901 = vst [vmem:[#allocation5] sm:$0xff] %v893
        %902 = vst [vmem:[#allocation5 + $0x8] sm:$0xf] %v894
        %903 = vst [vmem:[#allocation5 + $0xc] sm:$0xff] %v895
        %904 = vst [vmem:[#allocation5 + $0x14] sm:$0xf] %v896
        %905 = vst [vmem:[#allocation5 + $0x18] sm:$0xff] %v897
        %906 = vst [vmem:[#allocation5 + $0x20] sm:$0xf] %v898
        %907 = vst [vmem:[#allocation5 + $0x24] sm:$0xff] %v899
        %908 = vst [vmem:[#allocation5 + $0x2c] sm:$0xf] %v900
        %v909 = vld [vmem:[%s618] sm:$0xff]
        %v910 = vld [vmem:[#allocation12] sm:$0xff]
        %v911 = vld [vmem:[#allocation12 + $0x8] sm:$0xf]
        %v912 = vld [vmem:[#allocation12 + $0xc] sm:$0xff]
        %v913 = vld [vmem:[#allocation12 + $0x14] sm:$0xf]
        %v914 = vld [vmem:[#allocation12 + $0x18] sm:$0xff]
        %v915 = vld [vmem:[#allocation12 + $0x20] sm:$0xf]
        %v916 = vld [vmem:[#allocation12 + $0x24] sm:$0xff]
        %v917 = vld [vmem:[#allocation12 + $0x2c] sm:$0xf]
        %v918 = vld [vmem:[#allocation12 + $0x30] sm:$0xff]
        %v919 = vld [vmem:[#allocation12 + $0x38] sm:$0xf]
        %v920 = vld [vmem:[#allocation12 + $0x3c] sm:$0xff]
        %v921 = vld [vmem:[#allocation12 + $0x44] sm:$0xf]
        %v922 = vld [vmem:[#allocation12 + $0x48] sm:$0xff]
        %v923 = vld [vmem:[#allocation12 + $0x50] sm:$0xf]
        %v924 = vld [vmem:[#allocation12 + $0x54] sm:$0xff]
        %v925 = vld [vmem:[#allocation12 + $0x5c] sm:$0xf]
        %v926 = vld [vmem:[#allocation12 + $0x60] sm:$0xff]
        %v927 = vld [vmem:[#allocation12 + $0x68] sm:$0xf]
        %v928 = vld [vmem:[#allocation12 + $0x6c] sm:$0xff]
        %v929 = vld [vmem:[#allocation12 + $0x74] sm:$0xf]
        %v930 = vld [vmem:[#allocation12 + $0x78] sm:$0xff]
        %v931 = vld [vmem:[#allocation12 + $0x80] sm:$0xf]
        %v932 = vld [vmem:[#allocation12 + $0x84] sm:$0xff]
        %v933 = vld [vmem:[#allocation12 + $0x8c] sm:$0xf]
        %v934 = vld [vmem:[#allocation12 + $0x90] sm:$0xff]
        %v935 = vld [vmem:[#allocation12 + $0x98] sm:$0xf]
        %v936 = vld [vmem:[#allocation12 + $0x9c] sm:$0xff]
        %v937 = vld [vmem:[#allocation12 + $0xa4] sm:$0xf]
        %v938 = vld [vmem:[#allocation12 + $0xa8] sm:$0xff]
        %v939 = vld [vmem:[#allocation12 + $0xb0] sm:$0xf]
        %v940 = vld [vmem:[#allocation12 + $0xb4] sm:$0xff]
        %v941 = vld [vmem:[#allocation12 + $0xbc] sm:$0xf]
        %v942 = vld [vmem:[#allocation15] sm:$0xff]
        %v943 = vld [vmem:[#allocation15 + $0x8] sm:$0xf]
        %v944 = vld [vmem:[#allocation15 + $0xc] sm:$0xff]
        %v945 = vld [vmem:[#allocation15 + $0x14] sm:$0xf]
        %v946 = vld [vmem:[#allocation15 + $0x18] sm:$0xff]
        %v947 = vld [vmem:[#allocation15 + $0x20] sm:$0xf]
        %v948 = vld [vmem:[#allocation15 + $0x24] sm:$0xff]
        %v949 = vld [vmem:[#allocation15 + $0x2c] sm:$0xf]
        %v950 = vld [vmem:[#allocation15 + $0x30] sm:$0xff]
        %v951 = vld [vmem:[#allocation15 + $0x38] sm:$0xf]
        %v952 = vld [vmem:[#allocation15 + $0x3c] sm:$0xff]
        %v953 = vld [vmem:[#allocation15 + $0x44] sm:$0xf]
        %v954 = vld [vmem:[#allocation15 + $0x48] sm:$0xff]
        %v955 = vld [vmem:[#allocation15 + $0x50] sm:$0xf]
        %v956 = vld [vmem:[#allocation15 + $0x54] sm:$0xff]
        %v957 = vld [vmem:[#allocation15 + $0x5c] sm:$0xf]
        %v958 = vld [vmem:[#allocation15 + $0x60] sm:$0xff]
        %v959 = vld [vmem:[#allocation15 + $0x68] sm:$0xf]
        %v960 = vld [vmem:[#allocation15 + $0x6c] sm:$0xff]
        %v961 = vld [vmem:[#allocation15 + $0x74] sm:$0xf]
        %v962 = vld [vmem:[#allocation15 + $0x78] sm:$0xff]
        %v963 = vld [vmem:[#allocation15 + $0x80] sm:$0xf]
        %v964 = vld [vmem:[#allocation15 + $0x84] sm:$0xff]
        %v965 = vld [vmem:[#allocation15 + $0x8c] sm:$0xf]
        %v966 = vld [vmem:[#allocation15 + $0x90] sm:$0xff]
        %v967 = vld [vmem:[#allocation15 + $0x98] sm:$0xf]
        %v968 = vld [vmem:[#allocation15 + $0x9c] sm:$0xff]
        %v969 = vld [vmem:[#allocation15 + $0xa4] sm:$0xf]
        %v970 = vld [vmem:[#allocation15 + $0xa8] sm:$0xff]
        %v971 = vld [vmem:[#allocation15 + $0xb0] sm:$0xf]
        %v972 = vld [vmem:[#allocation15 + $0xb4] sm:$0xff]
        %v973 = vld [vmem:[#allocation15 + $0xbc] sm:$0xf]
        %v974 = vld [vmem:[%s6] sm:$0x1]
        %v975 = vld [vmem:[%s10] sm:$0x1]
        %v976 = vld [vmem:[#allocation2] sm:$0xff]
        %v977 = vld [vmem:[#allocation3] sm:$0xff]
        %v978 = vpack.c.bf16 %v976, %v976
        %v1011 = vunpack.c.l.b16 %v910
        %v1012 = vunpack.c.h.b16 %v910
        %v1013 = vunpack.c.l.b16 %v911
        %v1014 = vunpack.c.l.b16 %v912
        %v1015 = vunpack.c.h.b16 %v912
        %v1016 = vunpack.c.l.b16 %v913
        %v1017 = vunpack.c.l.b16 %v914
        %v1018 = vunpack.c.h.b16 %v914
        %v1019 = vunpack.c.l.b16 %v915
        %v1020 = vunpack.c.l.b16 %v916
        %v1021 = vunpack.c.h.b16 %v916
        %v1022 = vunpack.c.l.b16 %v917
        %v1023 = vunpack.c.l.b16 %v918
        %v1024 = vunpack.c.h.b16 %v918
        %v1025 = vunpack.c.l.b16 %v919
        %v1026 = vunpack.c.l.b16 %v920
        %v1027 = vunpack.c.h.b16 %v920
        %v1028 = vunpack.c.l.b16 %v921
        %v1029 = vunpack.c.l.b16 %v922
        %v1030 = vunpack.c.h.b16 %v922
        %v1031 = vunpack.c.l.b16 %v923
        %v1032 = vunpack.c.l.b16 %v924
        %v1033 = vunpack.c.h.b16 %v924
        %v1034 = vunpack.c.l.b16 %v925
        %v1035 = vunpack.c.l.b16 %v926
        %v1036 = vunpack.c.h.b16 %v926
        %v1037 = vunpack.c.l.b16 %v927
        %v1038 = vunpack.c.l.b16 %v928
        %v1039 = vunpack.c.h.b16 %v928
        %v1040 = vunpack.c.l.b16 %v929
        %v1041 = vunpack.c.l.b16 %v930
        %v1042 = vunpack.c.h.b16 %v930
        %v1043 = vunpack.c.l.b16 %v931
        %v1044 = vunpack.c.l.b16 %v932
        %v1045 = vunpack.c.h.b16 %v932
        %v1046 = vunpack.c.l.b16 %v933
        %v1047 = vunpack.c.l.b16 %v934
        %v1048 = vunpack.c.h.b16 %v934
        %v1049 = vunpack.c.l.b16 %v935
        %v1050 = vunpack.c.l.b16 %v936
        %v1051 = vunpack.c.h.b16 %v936
        %v1052 = vunpack.c.l.b16 %v937
        %v1053 = vunpack.c.l.b16 %v938
        %v1054 = vunpack.c.h.b16 %v938
        %v1055 = vunpack.c.l.b16 %v939
        %v1056 = vunpack.c.l.b16 %v940
        %v1057 = vunpack.c.h.b16 %v940
        %v1058 = vunpack.c.l.b16 %v941
        %v1059 = vpack.c.b16 %v1014, %v1011
        %v1060 = vpack.c.b16 %v1015, %v1012
        %v1061 = vpack.c.b16 %v1016, %v1013
        %v1062 = vpack.c.b16 %v1020, %v1017
        %v1063 = vpack.c.b16 %v1021, %v1018
        %v1064 = vpack.c.b16 %v1022, %v1019
        %v1065 = vpack.c.b16 %v1026, %v1023
        %v1066 = vpack.c.b16 %v1027, %v1024
        %v1067 = vpack.c.b16 %v1028, %v1025
        %v1068 = vpack.c.b16 %v1032, %v1029
        %v1069 = vpack.c.b16 %v1033, %v1030
        %v1070 = vpack.c.b16 %v1034, %v1031
        %v1071 = vpack.c.b16 %v1038, %v1035
        %v1072 = vpack.c.b16 %v1039, %v1036
        %v1073 = vpack.c.b16 %v1040, %v1037
        %v1074 = vpack.c.b16 %v1044, %v1041
        %v1075 = vpack.c.b16 %v1045, %v1042
        %v1076 = vpack.c.b16 %v1046, %v1043
        %v1077 = vpack.c.b16 %v1050, %v1047
        %v1078 = vpack.c.b16 %v1051, %v1048
        %v1079 = vpack.c.b16 %v1052, %v1049
        %v1080 = vpack.c.b16 %v1056, %v1053
        %v1081 = vpack.c.b16 %v1057, %v1054
        %v1082 = vpack.c.b16 %v1058, %v1055
        %1107 = vmatpush.bf16.msra.mxu0 %v1080
        %1108 = vmatpush.bf16.msra.mxu0 %v1077
        %1109 = vmatpush.bf16.msra.mxu0 %v1074
        %1110 = vmatpush.bf16.msra.mxu0 %v1071
        %1111 = vmatpush.bf16.msra.mxu0 %v1068
        %1112 = vmatpush.bf16.msra.mxu0 %v1065
        %1113 = vmatpush.bf16.msra.mxu0 %v1062
        %1114 = vmatpush.bf16.msra.mxu0 %v1059
        %1115 = vmatmul.bf16.gmra.mxu0 %v978
        %v1116 = vpop.f32.mrf.mxu0
        %v1117 = vadd.f32 0.0, %v1116
        %v1118 = vpop.f32.mrf.mxu0
        %1119 = vdwg.mxu0
        %1120 = vmatpush.bf16.msra.mxu0 %v1081
        %1121 = vmatpush.bf16.msra.mxu0 %v1078
        %1122 = vmatpush.bf16.msra.mxu0 %v1075
        %1123 = vmatpush.bf16.msra.mxu0 %v1072
        %1124 = vmatpush.bf16.msra.mxu0 %v1069
        %1125 = vmatpush.bf16.msra.mxu0 %v1066
        %1126 = vmatpush.bf16.msra.mxu0 %v1063
        %1127 = vmatpush.bf16.msra.mxu0 %v1060
        %1128 = vmatmul.bf16.gmra.mxu0 %v978
        %v1129 = vpop.f32.mrf.mxu0
        %v1130 = vadd.f32 0.0, %v1129
        %v1131 = vpop.f32.mrf.mxu0
        %1132 = vdwg.mxu0
        %1133 = vmatpush.bf16.msra.mxu0 %v1082
        %1134 = vmatpush.bf16.msra.mxu0 %v1079
        %1135 = vmatpush.bf16.msra.mxu0 %v1076
        %1136 = vmatpush.bf16.msra.mxu0 %v1073
        %1137 = vmatpush.bf16.msra.mxu0 %v1070
        %1138 = vmatpush.bf16.msra.mxu0 %v1067
        %1139 = vmatpush.bf16.msra.mxu0 %v1064
        %1140 = vmatpush.bf16.msra.mxu0 %v1061
        %1141 = vmatmul.bf16.gmra.mxu0 %v978
        %v1142 = vpop.f32.mrf.mxu0
        %v1143 = vadd.f32 0.0, %v1142
        %v1144 = vpop.f32.mrf.mxu0
        %1145 = vdwg.mxu0
        %v1146 = vpack.c.bf16 %v977, %v977
        %v1179 = vunpack.c.l.b16 %v942
        %v1180 = vunpack.c.h.b16 %v942
        %v1181 = vunpack.c.l.b16 %v943
        %v1182 = vunpack.c.l.b16 %v944
        %v1183 = vunpack.c.h.b16 %v944
        %v1184 = vunpack.c.l.b16 %v945
        %v1185 = vunpack.c.l.b16 %v946
        %v1186 = vunpack.c.h.b16 %v946
        %v1187 = vunpack.c.l.b16 %v947
        %v1188 = vunpack.c.l.b16 %v948
        %v1189 = vunpack.c.h.b16 %v948
        %v1190 = vunpack.c.l.b16 %v949
        %v1191 = vunpack.c.l.b16 %v950
        %v1192 = vunpack.c.h.b16 %v950
        %v1193 = vunpack.c.l.b16 %v951
        %v1194 = vunpack.c.l.b16 %v952
        %v1195 = vunpack.c.h.b16 %v952
        %v1196 = vunpack.c.l.b16 %v953
        %v1197 = vunpack.c.l.b16 %v954
        %v1198 = vunpack.c.h.b16 %v954
        %v1199 = vunpack.c.l.b16 %v955
        %v1200 = vunpack.c.l.b16 %v956
        %v1201 = vunpack.c.h.b16 %v956
        %v1202 = vunpack.c.l.b16 %v957
        %v1203 = vunpack.c.l.b16 %v958
        %v1204 = vunpack.c.h.b16 %v958
        %v1205 = vunpack.c.l.b16 %v959
        %v1206 = vunpack.c.l.b16 %v960
        %v1207 = vunpack.c.h.b16 %v960
        %v1208 = vunpack.c.l.b16 %v961
        %v1209 = vunpack.c.l.b16 %v962
        %v1210 = vunpack.c.h.b16 %v962
        %v1211 = vunpack.c.l.b16 %v963
        %v1212 = vunpack.c.l.b16 %v964
        %v1213 = vunpack.c.h.b16 %v964
        %v1214 = vunpack.c.l.b16 %v965
        %v1215 = vunpack.c.l.b16 %v966
        %v1216 = vunpack.c.h.b16 %v966
        %v1217 = vunpack.c.l.b16 %v967
        %v1218 = vunpack.c.l.b16 %v968
        %v1219 = vunpack.c.h.b16 %v968
        %v1220 = vunpack.c.l.b16 %v969
        %v1221 = vunpack.c.l.b16 %v970
        %v1222 = vunpack.c.h.b16 %v970
        %v1223 = vunpack.c.l.b16 %v971
        %v1224 = vunpack.c.l.b16 %v972
        %v1225 = vunpack.c.h.b16 %v972
        %v1226 = vunpack.c.l.b16 %v973
        %v1227 = vpack.c.b16 %v1182, %v1179
        %v1228 = vpack.c.b16 %v1183, %v1180
        %v1229 = vpack.c.b16 %v1184, %v1181
        %v1230 = vpack.c.b16 %v1188, %v1185
        %v1231 = vpack.c.b16 %v1189, %v1186
        %v1232 = vpack.c.b16 %v1190, %v1187
        %v1233 = vpack.c.b16 %v1194, %v1191
        %v1234 = vpack.c.b16 %v1195, %v1192
        %v1235 = vpack.c.b16 %v1196, %v1193
        %v1236 = vpack.c.b16 %v1200, %v1197
        %v1237 = vpack.c.b16 %v1201, %v1198
        %v1238 = vpack.c.b16 %v1202, %v1199
        %v1239 = vpack.c.b16 %v1206, %v1203
        %v1240 = vpack.c.b16 %v1207, %v1204
        %v1241 = vpack.c.b16 %v1208, %v1205
        %v1242 = vpack.c.b16 %v1212, %v1209
        %v1243 = vpack.c.b16 %v1213, %v1210
        %v1244 = vpack.c.b16 %v1214, %v1211
        %v1245 = vpack.c.b16 %v1218, %v1215
        %v1246 = vpack.c.b16 %v1219, %v1216
        %v1247 = vpack.c.b16 %v1220, %v1217
        %v1248 = vpack.c.b16 %v1224, %v1221
        %v1249 = vpack.c.b16 %v1225, %v1222
        %v1250 = vpack.c.b16 %v1226, %v1223
        %1275 = vmatpush.bf16.msra.mxu0 %v1248
        %1276 = vmatpush.bf16.msra.mxu0 %v1245
        %1277 = vmatpush.bf16.msra.mxu0 %v1242
        %1278 = vmatpush.bf16.msra.mxu0 %v1239
        %1279 = vmatpush.bf16.msra.mxu0 %v1236
        %1280 = vmatpush.bf16.msra.mxu0 %v1233
        %1281 = vmatpush.bf16.msra.mxu0 %v1230
        %1282 = vmatpush.bf16.msra.mxu0 %v1227
        %1283 = vmatmul.bf16.gmra.mxu0 %v1146
        %v1284 = vpop.f32.mrf.mxu0
        %v1285 = vadd.f32 0.0, %v1284
        %v1286 = vpop.f32.mrf.mxu0
        %1287 = vdwg.mxu0
        %1288 = vmatpush.bf16.msra.mxu0 %v1249
        %1289 = vmatpush.bf16.msra.mxu0 %v1246
        %1290 = vmatpush.bf16.msra.mxu0 %v1243
        %1291 = vmatpush.bf16.msra.mxu0 %v1240
        %1292 = vmatpush.bf16.msra.mxu0 %v1237
        %1293 = vmatpush.bf16.msra.mxu0 %v1234
        %1294 = vmatpush.bf16.msra.mxu0 %v1231
        %1295 = vmatpush.bf16.msra.mxu0 %v1228
        %1296 = vmatmul.bf16.gmra.mxu0 %v1146
        %v1297 = vpop.f32.mrf.mxu0
        %v1298 = vadd.f32 0.0, %v1297
        %v1299 = vpop.f32.mrf.mxu0
        %1300 = vdwg.mxu0
        %1301 = vmatpush.bf16.msra.mxu0 %v1250
        %1302 = vmatpush.bf16.msra.mxu0 %v1247
        %1303 = vmatpush.bf16.msra.mxu0 %v1244
        %1304 = vmatpush.bf16.msra.mxu0 %v1241
        %1305 = vmatpush.bf16.msra.mxu0 %v1238
        %1306 = vmatpush.bf16.msra.mxu0 %v1235
        %1307 = vmatpush.bf16.msra.mxu0 %v1232
        %1308 = vmatpush.bf16.msra.mxu0 %v1229
        %1309 = vmatmul.bf16.gmra.mxu0 %v1146
        %v1310 = vpop.f32.mrf.mxu0
        %v1311 = vadd.f32 0.0, %v1310
        %v1312 = vpop.f32.mrf.mxu0
        %1313 = vdwg.mxu0
        %v1314 = vld [vmem:[#allocation4] sm:$0xff]
        %v1315 = vld [vmem:[#allocation4 + $0x8] sm:$0xf]
        %v1316 = vunpack.c.l.bf16 %v1314
        %v1317 = vadd.f32 %v1316, %v1117
        %v1318 = vmul.f32 %v1317, 0.5
        %v1319 = vtanh.pop %v1318
        %v1320 = vadd.f32 %v1319, 1.0
        %v1321 = vmul.f32 %v1320, 0.5
        %v1323 = vrot.slane %v1314, 4
        %v1325 = vunpack.c.l.bf16 %v1323
        %v1326 = vadd.f32 %v1325, %v1130
        %v1327 = vmul.f32 %v1326, 0.5
        %v1328 = vtanh.pop %v1327
        %v1329 = vadd.f32 %v1328, 1.0
        %v1330 = vmul.f32 %v1329, 0.5
        %v1332 = vperm.slane %v974, 0
        %v1334 = vadd.f32 %v1143, %v1332
        %v1335 = vmul.f32 %v1321, %v1334
        %v1336 = vunpack.c.l.bf16 %v1315
        %v1337 = vadd.f32 %v1336, %v1335
        %v1338 = vtanh.pop %v1337
        %v1339 = vsub.f32 1.0, %v1330
        %v1340 = vmul.f32 %v1339, %v1338
        %v1341 = vmul.f32 %v1330, %v976
        %v1342 = vadd.f32 %v1340, %v1341
        %s1343 = scalar_lea.vmem [#allocation5], 36
        %v1344 = vld [vmem:[%s1343] sm:$0xff]
        %v1345 = vld [vmem:[%s1343 + $0x8] sm:$0xf]
        %v1346 = vunpack.c.l.bf16 %v1344
        %v1347 = vadd.f32 %v1346, %v1285
        %v1348 = vmul.f32 %v1347, 0.5
        %v1349 = vtanh.pop %v1348
        %v1350 = vadd.f32 %v1349, 1.0
        %v1351 = vmul.f32 %v1350, 0.5
        %v1353 = vrot.slane %v1344, 4
        %v1355 = vunpack.c.l.bf16 %v1353
        %v1356 = vadd.f32 %v1355, %v1298
        %v1357 = vmul.f32 %v1356, 0.5
        %v1358 = vtanh.pop %v1357
        %v1359 = vadd.f32 %v1358, 1.0
        %v1360 = vmul.f32 %v1359, 0.5
        %v1362 = vperm.slane %v975, 0
        %v1364 = vadd.f32 %v1311, %v1362
        %v1365 = vmul.f32 %v1351, %v1364
        %v1366 = vunpack.c.l.bf16 %v1345
        %v1367 = vadd.f32 %v1366, %v1365
        %v1368 = vtanh.pop %v1367
        %v1369 = vsub.f32 1.0, %v1360
        %v1370 = vmul.f32 %v1369, %v1368
        %v1371 = vmul.f32 %v1360, %v977
        %v1372 = vadd.f32 %v1370, %v1371
        %s1373 = smul.u32 %s38, 4
        %s1374 = ssub.s32 7, %s1373
        %v1375 = vstv %s1373
        %vm1376 = vcmp.lt.s32.totalorder %v1375, %v909
        %v1377 = vsel %vm1376, 1, 0
        %1378 = vset.pattern.permute.xlu0 0
        %1379 = vperm.xlu0 %1378, %v1377
        %v1380 = vpop.permute.xlu0 %1379
        %vm1381 = vcmp.eq.s32.totalorder %v1380, 1
        %v1382 = vsel %vm1381, %v1342, %v976
        %v1383 = vstv %s1374
        %vm1384 = vcmp.lt.s32.totalorder %v1383, %v909
        %v1385 = vsel %vm1384, 1, 0
        %1386 = vset.pattern.permute.xlu0 0
        %1387 = vperm.xlu0 %1386, %v1385
        %v1388 = vpop.permute.xlu0 %1387
        %vm1389 = vcmp.eq.s32.totalorder %v1388, 1
        %v1390 = vsel %vm1389, %v1372, %v977
        %v1391 = vpack.c.bf16 %v1382, %v1382
        %1392 = vmatpush.bf16.msra.mxu0 %v1080
        %1393 = vmatpush.bf16.msra.mxu0 %v1077
        %1394 = vmatpush.bf16.msra.mxu0 %v1074
        %1395 = vmatpush.bf16.msra.mxu0 %v1071
        %1396 = vmatpush.bf16.msra.mxu0 %v1068
        %1397 = vmatpush.bf16.msra.mxu0 %v1065
        %1398 = vmatpush.bf16.msra.mxu0 %v1062
        %1399 = vmatpush.bf16.msra.mxu0 %v1059
        %1400 = vmatmul.bf16.gmra.mxu0 %v1391
        %v1401 = vpop.f32.mrf.mxu0
        %v1402 = vadd.f32 0.0, %v1401
        %v1403 = vpop.f32.mrf.mxu0
        %1404 = vdwg.mxu0
        %1405 = vmatpush.bf16.msra.mxu0 %v1081
        %1406 = vmatpush.bf16.msra.mxu0 %v1078
        %1407 = vmatpush.bf16.msra.mxu0 %v1075
        %1408 = vmatpush.bf16.msra.mxu0 %v1072
        %1409 = vmatpush.bf16.msra.mxu0 %v1069
        %1410 = vmatpush.bf16.msra.mxu0 %v1066
        %1411 = vmatpush.bf16.msra.mxu0 %v1063
        %1412 = vmatpush.bf16.msra.mxu0 %v1060
        %1413 = vmatmul.bf16.gmra.mxu0 %v1391
        %v1414 = vpop.f32.mrf.mxu0
        %v1415 = vadd.f32 0.0, %v1414
        %v1416 = vpop.f32.mrf.mxu0
        %1417 = vdwg.mxu0
        %1418 = vmatpush.bf16.msra.mxu0 %v1082
        %1419 = vmatpush.bf16.msra.mxu0 %v1079
        %1420 = vmatpush.bf16.msra.mxu0 %v1076
        %1421 = vmatpush.bf16.msra.mxu0 %v1073
        %1422 = vmatpush.bf16.msra.mxu0 %v1070
        %1423 = vmatpush.bf16.msra.mxu0 %v1067
        %1424 = vmatpush.bf16.msra.mxu0 %v1064
        %1425 = vmatpush.bf16.msra.mxu0 %v1061
        %1426 = vmatmul.bf16.gmra.mxu0 %v1391
        %v1427 = vpop.f32.mrf.mxu0
        %v1428 = vadd.f32 0.0, %v1427
        %v1429 = vpop.f32.mrf.mxu0
        %1430 = vdwg.mxu0
        %v1431 = vpack.c.bf16 %v1390, %v1390
        %1432 = vmatpush.bf16.msra.mxu0 %v1248
        %1433 = vmatpush.bf16.msra.mxu0 %v1245
        %1434 = vmatpush.bf16.msra.mxu0 %v1242
        %1435 = vmatpush.bf16.msra.mxu0 %v1239
        %1436 = vmatpush.bf16.msra.mxu0 %v1236
        %1437 = vmatpush.bf16.msra.mxu0 %v1233
        %1438 = vmatpush.bf16.msra.mxu0 %v1230
        %1439 = vmatpush.bf16.msra.mxu0 %v1227
        %1440 = vmatmul.bf16.gmra.mxu0 %v1431
        %v1441 = vpop.f32.mrf.mxu0
        %v1442 = vadd.f32 0.0, %v1441
        %v1443 = vpop.f32.mrf.mxu0
        %1444 = vdwg.mxu0
        %1445 = vmatpush.bf16.msra.mxu0 %v1249
        %1446 = vmatpush.bf16.msra.mxu0 %v1246
        %1447 = vmatpush.bf16.msra.mxu0 %v1243
        %1448 = vmatpush.bf16.msra.mxu0 %v1240
        %1449 = vmatpush.bf16.msra.mxu0 %v1237
        %1450 = vmatpush.bf16.msra.mxu0 %v1234
        %1451 = vmatpush.bf16.msra.mxu0 %v1231
        %1452 = vmatpush.bf16.msra.mxu0 %v1228
        %1453 = vmatmul.bf16.gmra.mxu0 %v1431
        %v1454 = vpop.f32.mrf.mxu0
        %v1455 = vadd.f32 0.0, %v1454
        %v1456 = vpop.f32.mrf.mxu0
        %1457 = vdwg.mxu0
        %1458 = vmatpush.bf16.msra.mxu0 %v1250
        %1459 = vmatpush.bf16.msra.mxu0 %v1247
        %1460 = vmatpush.bf16.msra.mxu0 %v1244
        %1461 = vmatpush.bf16.msra.mxu0 %v1241
        %1462 = vmatpush.bf16.msra.mxu0 %v1238
        %1463 = vmatpush.bf16.msra.mxu0 %v1235
        %1464 = vmatpush.bf16.msra.mxu0 %v1232
        %1465 = vmatpush.bf16.msra.mxu0 %v1229
        %1466 = vmatmul.bf16.gmra.mxu0 %v1431
        %v1467 = vpop.f32.mrf.mxu0
        %v1468 = vadd.f32 0.0, %v1467
        %v1469 = vpop.f32.mrf.mxu0
        %1470 = vdwg.mxu0
        %s1471 = scalar_lea.vmem [#allocation4], 12
        %v1472 = vld [vmem:[%s1471] sm:$0xff]
        %v1473 = vld [vmem:[%s1471 + $0x8] sm:$0xf]
        %v1474 = vunpack.c.l.bf16 %v1472
        %v1475 = vadd.f32 %v1474, %v1402
        %v1476 = vmul.f32 %v1475, 0.5
        %v1477 = vtanh.pop %v1476
        %v1478 = vadd.f32 %v1477, 1.0
        %v1479 = vmul.f32 %v1478, 0.5
        %v1481 = vrot.slane %v1472, 4
        %v1483 = vunpack.c.l.bf16 %v1481
        %v1484 = vadd.f32 %v1483, %v1415
        %v1485 = vmul.f32 %v1484, 0.5
        %v1486 = vtanh.pop %v1485
        %v1487 = vadd.f32 %v1486, 1.0
        %v1488 = vmul.f32 %v1487, 0.5
        %v1489 = vadd.f32 %v1428, %v1332
        %v1490 = vmul.f32 %v1479, %v1489
        %v1491 = vunpack.c.l.bf16 %v1473
        %v1492 = vadd.f32 %v1491, %v1490
        %v1493 = vtanh.pop %v1492
        %v1494 = vsub.f32 1.0, %v1488
        %v1495 = vmul.f32 %v1494, %v1493
        %v1496 = vmul.f32 %v1488, %v1382
        %v1497 = vadd.f32 %v1495, %v1496
        %s1498 = scalar_lea.vmem [#allocation5], 24
        %v1499 = vld [vmem:[%s1498] sm:$0xff]
        %v1500 = vld [vmem:[%s1498 + $0x8] sm:$0xf]
        %v1501 = vunpack.c.l.bf16 %v1499
        %v1502 = vadd.f32 %v1501, %v1442
        %v1503 = vmul.f32 %v1502, 0.5
        %v1504 = vtanh.pop %v1503
        %v1505 = vadd.f32 %v1504, 1.0
        %v1506 = vmul.f32 %v1505, 0.5
        %v1508 = vrot.slane %v1499, 4
        %v1510 = vunpack.c.l.bf16 %v1508
        %v1511 = vadd.f32 %v1510, %v1455
        %v1512 = vmul.f32 %v1511, 0.5
        %v1513 = vtanh.pop %v1512
        %v1514 = vadd.f32 %v1513, 1.0
        %v1515 = vmul.f32 %v1514, 0.5
        %v1516 = vadd.f32 %v1468, %v1362
        %v1517 = vmul.f32 %v1506, %v1516
        %v1518 = vunpack.c.l.bf16 %v1500
        %v1519 = vadd.f32 %v1518, %v1517
        %v1520 = vtanh.pop %v1519
        %v1521 = vsub.f32 1.0, %v1515
        %v1522 = vmul.f32 %v1521, %v1520
        %v1523 = vmul.f32 %v1515, %v1390
        %v1524 = vadd.f32 %v1522, %v1523
        %s1525 = sadd.s32 %s1373, 1
        %s1526 = ssub.s32 6, %s1373
        %v1527 = vstv %s1525
        %vm1528 = vcmp.lt.s32.totalorder %v1527, %v909
        %v1529 = vsel %vm1528, 1, 0
        %1530 = vset.pattern.permute.xlu0 0
        %1531 = vperm.xlu0 %1530, %v1529
        %v1532 = vpop.permute.xlu0 %1531
        %vm1533 = vcmp.eq.s32.totalorder %v1532, 1
        %v1534 = vsel %vm1533, %v1497, %v1382
        %v1535 = vstv %s1526
        %vm1536 = vcmp.lt.s32.totalorder %v1535, %v909
        %v1537 = vsel %vm1536, 1, 0
        %1538 = vset.pattern.permute.xlu0 0
        %1539 = vperm.xlu0 %1538, %v1537
        %v1540 = vpop.permute.xlu0 %1539
        %vm1541 = vcmp.eq.s32.totalorder %v1540, 1
        %v1542 = vsel %vm1541, %v1524, %v1390
        %v1543 = vpack.c.bf16 %v1534, %v1534
        %1544 = vmatpush.bf16.msra.mxu0 %v1080
        %1545 = vmatpush.bf16.msra.mxu0 %v1077
        %1546 = vmatpush.bf16.msra.mxu0 %v1074
        %1547 = vmatpush.bf16.msra.mxu0 %v1071
        %1548 = vmatpush.bf16.msra.mxu0 %v1068
        %1549 = vmatpush.bf16.msra.mxu0 %v1065
        %1550 = vmatpush.bf16.msra.mxu0 %v1062
        %1551 = vmatpush.bf16.msra.mxu0 %v1059
        %1552 = vmatmul.bf16.gmra.mxu0 %v1543
        %v1553 = vpop.f32.mrf.mxu0
        %v1554 = vadd.f32 0.0, %v1553
        %v1555 = vpop.f32.mrf.mxu0
        %1556 = vdwg.mxu0
        %1557 = vmatpush.bf16.msra.mxu0 %v1081
        %1558 = vmatpush.bf16.msra.mxu0 %v1078
        %1559 = vmatpush.bf16.msra.mxu0 %v1075
        %1560 = vmatpush.bf16.msra.mxu0 %v1072
        %1561 = vmatpush.bf16.msra.mxu0 %v1069
        %1562 = vmatpush.bf16.msra.mxu0 %v1066
        %1563 = vmatpush.bf16.msra.mxu0 %v1063
        %1564 = vmatpush.bf16.msra.mxu0 %v1060
        %1565 = vmatmul.bf16.gmra.mxu0 %v1543
        %v1566 = vpop.f32.mrf.mxu0
        %v1567 = vadd.f32 0.0, %v1566
        %v1568 = vpop.f32.mrf.mxu0
        %1569 = vdwg.mxu0
        %1570 = vmatpush.bf16.msra.mxu0 %v1082
        %1571 = vmatpush.bf16.msra.mxu0 %v1079
        %1572 = vmatpush.bf16.msra.mxu0 %v1076
        %1573 = vmatpush.bf16.msra.mxu0 %v1073
        %1574 = vmatpush.bf16.msra.mxu0 %v1070
        %1575 = vmatpush.bf16.msra.mxu0 %v1067
        %1576 = vmatpush.bf16.msra.mxu0 %v1064
        %1577 = vmatpush.bf16.msra.mxu0 %v1061
        %1578 = vmatmul.bf16.gmra.mxu0 %v1543
        %v1579 = vpop.f32.mrf.mxu0
        %v1580 = vadd.f32 0.0, %v1579
        %v1581 = vpop.f32.mrf.mxu0
        %1582 = vdwg.mxu0
        %v1583 = vpack.c.bf16 %v1542, %v1542
        %1584 = vmatpush.bf16.msra.mxu0 %v1248
        %1585 = vmatpush.bf16.msra.mxu0 %v1245
        %1586 = vmatpush.bf16.msra.mxu0 %v1242
        %1587 = vmatpush.bf16.msra.mxu0 %v1239
        %1588 = vmatpush.bf16.msra.mxu0 %v1236
        %1589 = vmatpush.bf16.msra.mxu0 %v1233
        %1590 = vmatpush.bf16.msra.mxu0 %v1230
        %1591 = vmatpush.bf16.msra.mxu0 %v1227
        %1592 = vmatmul.bf16.gmra.mxu0 %v1583
        %v1593 = vpop.f32.mrf.mxu0
        %v1594 = vadd.f32 0.0, %v1593
        %v1595 = vpop.f32.mrf.mxu0
        %1596 = vdwg.mxu0
        %1597 = vmatpush.bf16.msra.mxu0 %v1249
        %1598 = vmatpush.bf16.msra.mxu0 %v1246
        %1599 = vmatpush.bf16.msra.mxu0 %v1243
        %1600 = vmatpush.bf16.msra.mxu0 %v1240
        %1601 = vmatpush.bf16.msra.mxu0 %v1237
        %1602 = vmatpush.bf16.msra.mxu0 %v1234
        %1603 = vmatpush.bf16.msra.mxu0 %v1231
        %1604 = vmatpush.bf16.msra.mxu0 %v1228
        %1605 = vmatmul.bf16.gmra.mxu0 %v1583
        %v1606 = vpop.f32.mrf.mxu0
        %v1607 = vadd.f32 0.0, %v1606
        %v1608 = vpop.f32.mrf.mxu0
        %1609 = vdwg.mxu0
        %1610 = vmatpush.bf16.msra.mxu0 %v1250
        %1611 = vmatpush.bf16.msra.mxu0 %v1247
        %1612 = vmatpush.bf16.msra.mxu0 %v1244
        %1613 = vmatpush.bf16.msra.mxu0 %v1241
        %1614 = vmatpush.bf16.msra.mxu0 %v1238
        %1615 = vmatpush.bf16.msra.mxu0 %v1235
        %1616 = vmatpush.bf16.msra.mxu0 %v1232
        %1617 = vmatpush.bf16.msra.mxu0 %v1229
        %1618 = vmatmul.bf16.gmra.mxu0 %v1583
        %v1619 = vpop.f32.mrf.mxu0
        %v1620 = vadd.f32 0.0, %v1619
        %v1621 = vpop.f32.mrf.mxu0
        %1622 = vdwg.mxu0
        %s1623 = scalar_lea.vmem [#allocation4], 24
        %v1624 = vld [vmem:[%s1623] sm:$0xff]
        %v1625 = vld [vmem:[%s1623 + $0x8] sm:$0xf]
        %v1626 = vunpack.c.l.bf16 %v1624
        %v1627 = vadd.f32 %v1626, %v1554
        %v1628 = vmul.f32 %v1627, 0.5
        %v1629 = vtanh.pop %v1628
        %v1630 = vadd.f32 %v1629, 1.0
        %v1631 = vmul.f32 %v1630, 0.5
        %v1633 = vrot.slane %v1624, 4
        %v1635 = vunpack.c.l.bf16 %v1633
        %v1636 = vadd.f32 %v1635, %v1567
        %v1637 = vmul.f32 %v1636, 0.5
        %v1638 = vtanh.pop %v1637
        %v1639 = vadd.f32 %v1638, 1.0
        %v1640 = vmul.f32 %v1639, 0.5
        %v1641 = vadd.f32 %v1580, %v1332
        %v1642 = vmul.f32 %v1631, %v1641
        %v1643 = vunpack.c.l.bf16 %v1625
        %v1644 = vadd.f32 %v1643, %v1642
        %v1645 = vtanh.pop %v1644
        %v1646 = vsub.f32 1.0, %v1640
        %v1647 = vmul.f32 %v1646, %v1645
        %v1648 = vmul.f32 %v1640, %v1534
        %v1649 = vadd.f32 %v1647, %v1648
        %s1650 = scalar_lea.vmem [#allocation5], 12
        %v1651 = vld [vmem:[%s1650] sm:$0xff]
        %v1652 = vld [vmem:[%s1650 + $0x8] sm:$0xf]
        %v1653 = vunpack.c.l.bf16 %v1651
        %v1654 = vadd.f32 %v1653, %v1594
        %v1655 = vmul.f32 %v1654, 0.5
        %v1656 = vtanh.pop %v1655
        %v1657 = vadd.f32 %v1656, 1.0
        %v1658 = vmul.f32 %v1657, 0.5
        %v1660 = vrot.slane %v1651, 4
        %v1662 = vunpack.c.l.bf16 %v1660
        %v1663 = vadd.f32 %v1662, %v1607
        %v1664 = vmul.f32 %v1663, 0.5
        %v1665 = vtanh.pop %v1664
        %v1666 = vadd.f32 %v1665, 1.0
        %v1667 = vmul.f32 %v1666, 0.5
        %v1668 = vadd.f32 %v1620, %v1362
        %v1669 = vmul.f32 %v1658, %v1668
        %v1670 = vunpack.c.l.bf16 %v1652
        %v1671 = vadd.f32 %v1670, %v1669
        %v1672 = vtanh.pop %v1671
        %v1673 = vsub.f32 1.0, %v1667
        %v1674 = vmul.f32 %v1673, %v1672
        %v1675 = vmul.f32 %v1667, %v1542
        %v1676 = vadd.f32 %v1674, %v1675
        %s1677 = sadd.s32 %s1373, 2
        %s1678 = ssub.s32 5, %s1373
        %v1679 = vstv %s1677
        %vm1680 = vcmp.lt.s32.totalorder %v1679, %v909
        %v1681 = vsel %vm1680, 1, 0
        %1682 = vset.pattern.permute.xlu0 0
        %1683 = vperm.xlu0 %1682, %v1681
        %v1684 = vpop.permute.xlu0 %1683
        %vm1685 = vcmp.eq.s32.totalorder %v1684, 1
        %v1686 = vsel %vm1685, %v1649, %v1534
        %v1687 = vstv %s1678
        %vm1688 = vcmp.lt.s32.totalorder %v1687, %v909
        %v1689 = vsel %vm1688, 1, 0
        %1690 = vset.pattern.permute.xlu0 0
        %1691 = vperm.xlu0 %1690, %v1689
        %v1692 = vpop.permute.xlu0 %1691
        %vm1693 = vcmp.eq.s32.totalorder %v1692, 1
        %v1694 = vsel %vm1693, %v1676, %v1542
        %v1695 = vpack.c.bf16 %v1686, %v1686
        %1696 = vmatpush.bf16.msra.mxu0 %v1080
        %1697 = vmatpush.bf16.msra.mxu0 %v1077
        %1698 = vmatpush.bf16.msra.mxu0 %v1074
        %1699 = vmatpush.bf16.msra.mxu0 %v1071
        %1700 = vmatpush.bf16.msra.mxu0 %v1068
        %1701 = vmatpush.bf16.msra.mxu0 %v1065
        %1702 = vmatpush.bf16.msra.mxu0 %v1062
        %1703 = vmatpush.bf16.msra.mxu0 %v1059
        %1704 = vmatmul.bf16.gmra.mxu0 %v1695
        %v1705 = vpop.f32.mrf.mxu0
        %v1706 = vadd.f32 0.0, %v1705
        %v1707 = vpop.f32.mrf.mxu0
        %1708 = vdwg.mxu0
        %1709 = vmatpush.bf16.msra.mxu0 %v1081
        %1710 = vmatpush.bf16.msra.mxu0 %v1078
        %1711 = vmatpush.bf16.msra.mxu0 %v1075
        %1712 = vmatpush.bf16.msra.mxu0 %v1072
        %1713 = vmatpush.bf16.msra.mxu0 %v1069
        %1714 = vmatpush.bf16.msra.mxu0 %v1066
        %1715 = vmatpush.bf16.msra.mxu0 %v1063
        %1716 = vmatpush.bf16.msra.mxu0 %v1060
        %1717 = vmatmul.bf16.gmra.mxu0 %v1695
        %v1718 = vpop.f32.mrf.mxu0
        %v1719 = vadd.f32 0.0, %v1718
        %v1720 = vpop.f32.mrf.mxu0
        %1721 = vdwg.mxu0
        %1722 = vmatpush.bf16.msra.mxu0 %v1082
        %1723 = vmatpush.bf16.msra.mxu0 %v1079
        %1724 = vmatpush.bf16.msra.mxu0 %v1076
        %1725 = vmatpush.bf16.msra.mxu0 %v1073
        %1726 = vmatpush.bf16.msra.mxu0 %v1070
        %1727 = vmatpush.bf16.msra.mxu0 %v1067
        %1728 = vmatpush.bf16.msra.mxu0 %v1064
        %1729 = vmatpush.bf16.msra.mxu0 %v1061
        %1730 = vmatmul.bf16.gmra.mxu0 %v1695
        %v1731 = vpop.f32.mrf.mxu0
        %v1732 = vadd.f32 0.0, %v1731
        %v1733 = vpop.f32.mrf.mxu0
        %1734 = vdwg.mxu0
        %v1735 = vpack.c.bf16 %v1694, %v1694
        %1736 = vmatpush.bf16.msra.mxu0 %v1248
        %1737 = vmatpush.bf16.msra.mxu0 %v1245
        %1738 = vmatpush.bf16.msra.mxu0 %v1242
        %1739 = vmatpush.bf16.msra.mxu0 %v1239
        %1740 = vmatpush.bf16.msra.mxu0 %v1236
        %1741 = vmatpush.bf16.msra.mxu0 %v1233
        %1742 = vmatpush.bf16.msra.mxu0 %v1230
        %1743 = vmatpush.bf16.msra.mxu0 %v1227
        %1744 = vmatmul.bf16.gmra.mxu0 %v1735
        %v1745 = vpop.f32.mrf.mxu0
        %v1746 = vadd.f32 0.0, %v1745
        %v1747 = vpop.f32.mrf.mxu0
        %1748 = vdwg.mxu0
        %1749 = vmatpush.bf16.msra.mxu0 %v1249
        %1750 = vmatpush.bf16.msra.mxu0 %v1246
        %1751 = vmatpush.bf16.msra.mxu0 %v1243
        %1752 = vmatpush.bf16.msra.mxu0 %v1240
        %1753 = vmatpush.bf16.msra.mxu0 %v1237
        %1754 = vmatpush.bf16.msra.mxu0 %v1234
        %1755 = vmatpush.bf16.msra.mxu0 %v1231
        %1756 = vmatpush.bf16.msra.mxu0 %v1228
        %1757 = vmatmul.bf16.gmra.mxu0 %v1735
        %v1758 = vpop.f32.mrf.mxu0
        %v1759 = vadd.f32 0.0, %v1758
        %v1760 = vpop.f32.mrf.mxu0
        %1761 = vdwg.mxu0
        %1762 = vmatpush.bf16.msra.mxu0 %v1250
        %1763 = vmatpush.bf16.msra.mxu0 %v1247
        %1764 = vmatpush.bf16.msra.mxu0 %v1244
        %1765 = vmatpush.bf16.msra.mxu0 %v1241
        %1766 = vmatpush.bf16.msra.mxu0 %v1238
        %1767 = vmatpush.bf16.msra.mxu0 %v1235
        %1768 = vmatpush.bf16.msra.mxu0 %v1232
        %1769 = vmatpush.bf16.msra.mxu0 %v1229
        %1770 = vmatmul.bf16.gmra.mxu0 %v1735
        %v1771 = vpop.f32.mrf.mxu0
        %v1772 = vadd.f32 0.0, %v1771
        %v1773 = vpop.f32.mrf.mxu0
        %1774 = vdwg.mxu0
        %s1775 = scalar_lea.vmem [#allocation4], 36
        %v1776 = vld [vmem:[%s1775] sm:$0xff]
        %v1777 = vld [vmem:[%s1775 + $0x8] sm:$0xf]
        %v1778 = vunpack.c.l.bf16 %v1776
        %v1779 = vadd.f32 %v1778, %v1706
        %v1780 = vmul.f32 %v1779, 0.5
        %v1781 = vtanh.pop %v1780
        %v1782 = vadd.f32 %v1781, 1.0
        %v1783 = vmul.f32 %v1782, 0.5
        %v1785 = vrot.slane %v1776, 4
        %v1787 = vunpack.c.l.bf16 %v1785
        %v1788 = vadd.f32 %v1787, %v1719
        %v1789 = vmul.f32 %v1788, 0.5
        %v1790 = vtanh.pop %v1789
        %v1791 = vadd.f32 %v1790, 1.0
        %v1792 = vmul.f32 %v1791, 0.5
        %v1793 = vadd.f32 %v1732, %v1332
        %v1794 = vmul.f32 %v1783, %v1793
        %v1795 = vunpack.c.l.bf16 %v1777
        %v1796 = vadd.f32 %v1795, %v1794
        %v1797 = vtanh.pop %v1796
        %v1798 = vsub.f32 1.0, %v1792
        %v1799 = vmul.f32 %v1798, %v1797
        %v1800 = vmul.f32 %v1792, %v1686
        %v1801 = vadd.f32 %v1799, %v1800
        %v1802 = vld [vmem:[#allocation5] sm:$0xff]
        %v1803 = vld [vmem:[#allocation5 + $0x8] sm:$0xf]
        %v1804 = vunpack.c.l.bf16 %v1802
        %v1805 = vadd.f32 %v1804, %v1746
        %v1806 = vmul.f32 %v1805, 0.5
        %v1807 = vtanh.pop %v1806
        %v1808 = vadd.f32 %v1807, 1.0
        %v1809 = vmul.f32 %v1808, 0.5
        %v1811 = vrot.slane %v1802, 4
        %v1813 = vunpack.c.l.bf16 %v1811
        %v1814 = vadd.f32 %v1813, %v1759
        %v1815 = vmul.f32 %v1814, 0.5
        %v1816 = vtanh.pop %v1815
        %v1817 = vadd.f32 %v1816, 1.0
        %v1818 = vmul.f32 %v1817, 0.5
        %v1819 = vadd.f32 %v1772, %v1362
        %v1820 = vmul.f32 %v1809, %v1819
        %v1821 = vunpack.c.l.bf16 %v1803
        %v1822 = vadd.f32 %v1821, %v1820
        %v1823 = vtanh.pop %v1822
        %v1824 = vsub.f32 1.0, %v1818
        %v1825 = vmul.f32 %v1824, %v1823
        %v1826 = vmul.f32 %v1818, %v1694
        %v1827 = vadd.f32 %v1825, %v1826
        %s1828 = sadd.s32 %s1373, 3
        %s1829 = ssub.s32 4, %s1373
        %v1830 = vstv %s1828
        %vm1831 = vcmp.lt.s32.totalorder %v1830, %v909
        %v1832 = vsel %vm1831, 1, 0
        %1833 = vset.pattern.permute.xlu0 0
        %1834 = vperm.xlu0 %1833, %v1832
        %v1835 = vpop.permute.xlu0 %1834
        %vm1836 = vcmp.eq.s32.totalorder %v1835, 1
        %v1837 = vsel %vm1836, %v1801, %v1686
        %v1838 = vstv %s1829
        %vm1839 = vcmp.lt.s32.totalorder %v1838, %v909
        %v1840 = vsel %vm1839, 1, 0
        %1841 = vset.pattern.permute.xlu0 0
        %1842 = vperm.xlu0 %1841, %v1840
        %v1843 = vpop.permute.xlu0 %1842
        %vm1844 = vcmp.eq.s32.totalorder %v1843, 1
        %v1845 = vsel %vm1844, %v1827, %v1694
        %1846 = vst [vmem:[#allocation2] sm:$0xff] %v1837
        %1847 = vst [vmem:[#allocation3] sm:$0xff] %v1845
        %p1848 = scmp.eq.s32.totalorder %s38, 1
        // Predicated region
        $region105: #{tpu_custom_call.1} parent=71 // pred_check
          %p1849 = pneg %p1848
        $region106: #{tpu_custom_call.1} parent=71 // pred_check_branch
          %1851 = sbr.rel (%p1849) target = $region108
        $region107: #{tpu_custom_call.1} parent=71 // pred_region
          %v1852 = vpack.c.bf16 %v1845, %v1845
          %v1853 = vpack.c.bf16 %v1837, %v1837
          %v1854 = vld [vmem:[#allocation17] sm:$0xf]
          %v1855 = vld [vmem:[#allocation17 + $0x4] sm:$0xf]
          %v1856 = vld [vmem:[#allocation17 + $0x8] sm:$0xf]
          %v1857 = vld [vmem:[#allocation17 + $0xc] sm:$0xf]
          %v1858 = vld [vmem:[#allocation17 + $0x10] sm:$0xf]
          %v1859 = vld [vmem:[#allocation17 + $0x14] sm:$0xf]
          %v1860 = vld [vmem:[#allocation17 + $0x18] sm:$0xf]
          %v1861 = vld [vmem:[#allocation17 + $0x1c] sm:$0xf]
          %v1862 = vld [vmem:[#allocation17 + $0x20] sm:$0xf]
          %v1863 = vld [vmem:[#allocation17 + $0x24] sm:$0xf]
          %v1864 = vld [vmem:[#allocation17 + $0x28] sm:$0xf]
          %v1865 = vld [vmem:[#allocation17 + $0x2c] sm:$0xf]
          %v1866 = vld [vmem:[#allocation17 + $0x30] sm:$0xf]
          %v1867 = vld [vmem:[#allocation17 + $0x34] sm:$0xf]
          %v1868 = vld [vmem:[#allocation17 + $0x38] sm:$0xf]
          %v1869 = vld [vmem:[#allocation17 + $0x3c] sm:$0xf]
          %v1870 = vld [vmem:[#allocation17 + $0x40] sm:$0xf]
          %v1871 = vld [vmem:[#allocation17 + $0x44] sm:$0xf]
          %v1872 = vld [vmem:[#allocation17 + $0x48] sm:$0xf]
          %v1873 = vld [vmem:[#allocation17 + $0x4c] sm:$0xf]
          %v1874 = vld [vmem:[#allocation17 + $0x50] sm:$0xf]
          %v1875 = vld [vmem:[#allocation17 + $0x54] sm:$0xf]
          %v1876 = vld [vmem:[#allocation17 + $0x58] sm:$0xf]
          %v1877 = vld [vmem:[#allocation17 + $0x5c] sm:$0xf]
          %v1878 = vld [vmem:[#allocation17 + $0x60] sm:$0xf]
          %v1879 = vld [vmem:[#allocation17 + $0x64] sm:$0xf]
          %v1880 = vld [vmem:[#allocation17 + $0x68] sm:$0xf]
          %v1881 = vld [vmem:[#allocation17 + $0x6c] sm:$0xf]
          %v1882 = vld [vmem:[#allocation17 + $0x70] sm:$0xf]
          %v1883 = vld [vmem:[#allocation17 + $0x74] sm:$0xf]
          %v1884 = vld [vmem:[#allocation17 + $0x78] sm:$0xf]
          %v1885 = vld [vmem:[#allocation17 + $0x7c] sm:$0xf]
          %v1886 = vld [vmem:[%s12] sm:$0x1]
          %v1888 = vperm.slane %v1886, 0
          %v1922 = vunpack.c.l.b16 %v1854
          %v1923 = vunpack.c.l.b16 %v1855
          %v1924 = vunpack.c.l.b16 %v1856
          %v1925 = vunpack.c.l.b16 %v1857
          %v1926 = vunpack.c.l.b16 %v1858
          %v1927 = vunpack.c.l.b16 %v1859
          %v1928 = vunpack.c.l.b16 %v1860
          %v1929 = vunpack.c.l.b16 %v1861
          %v1930 = vunpack.c.l.b16 %v1862
          %v1931 = vunpack.c.l.b16 %v1863
          %v1932 = vunpack.c.l.b16 %v1864
          %v1933 = vunpack.c.l.b16 %v1865
          %v1934 = vunpack.c.l.b16 %v1866
          %v1935 = vunpack.c.l.b16 %v1867
          %v1936 = vunpack.c.l.b16 %v1868
          %v1937 = vunpack.c.l.b16 %v1869
          %v1938 = vunpack.c.l.b16 %v1870
          %v1939 = vunpack.c.l.b16 %v1871
          %v1940 = vunpack.c.l.b16 %v1872
          %v1941 = vunpack.c.l.b16 %v1873
          %v1942 = vunpack.c.l.b16 %v1874
          %v1943 = vunpack.c.l.b16 %v1875
          %v1944 = vunpack.c.l.b16 %v1876
          %v1945 = vunpack.c.l.b16 %v1877
          %v1946 = vunpack.c.l.b16 %v1878
          %v1947 = vunpack.c.l.b16 %v1879
          %v1948 = vunpack.c.l.b16 %v1880
          %v1949 = vunpack.c.l.b16 %v1881
          %v1950 = vunpack.c.l.b16 %v1882
          %v1951 = vunpack.c.l.b16 %v1883
          %v1952 = vunpack.c.l.b16 %v1884
          %v1953 = vunpack.c.l.b16 %v1885
          %v1954 = vpack.c.b16 %v1923, %v1922
          %v1955 = vpack.c.b16 %v1925, %v1924
          %v1956 = vpack.c.b16 %v1927, %v1926
          %v1957 = vpack.c.b16 %v1929, %v1928
          %v1958 = vpack.c.b16 %v1931, %v1930
          %v1959 = vpack.c.b16 %v1933, %v1932
          %v1960 = vpack.c.b16 %v1935, %v1934
          %v1961 = vpack.c.b16 %v1937, %v1936
          %v1962 = vpack.c.b16 %v1939, %v1938
          %v1963 = vpack.c.b16 %v1941, %v1940
          %v1964 = vpack.c.b16 %v1943, %v1942
          %v1965 = vpack.c.b16 %v1945, %v1944
          %v1966 = vpack.c.b16 %v1947, %v1946
          %v1967 = vpack.c.b16 %v1949, %v1948
          %v1968 = vpack.c.b16 %v1951, %v1950
          %v1969 = vpack.c.b16 %v1953, %v1952
          %1986 = vmatpush.bf16.msra.mxu0 %v1961
          %1987 = vmatpush.bf16.msra.mxu0 %v1960
          %1988 = vmatpush.bf16.msra.mxu0 %v1959
          %1989 = vmatpush.bf16.msra.mxu0 %v1958
          %1990 = vmatpush.bf16.msra.mxu0 %v1957
          %1991 = vmatpush.bf16.msra.mxu0 %v1956
          %1992 = vmatpush.bf16.msra.mxu0 %v1955
          %1993 = vmatpush.bf16.msra.mxu0 %v1954
          %1994 = vmatmul.bf16.gmra.mxu0 %v1852
          %v1995 = vpop.f32.mrf.mxu0
          %v1996 = vadd.f32 %v1888, %v1995
          %v1997 = vpop.f32.mrf.mxu0
          %1998 = vdwg.mxu0
          %1999 = vmatpush.bf16.msra.mxu0 %v1969
          %2000 = vmatpush.bf16.msra.mxu0 %v1968
          %2001 = vmatpush.bf16.msra.mxu0 %v1967
          %2002 = vmatpush.bf16.msra.mxu0 %v1966
          %2003 = vmatpush.bf16.msra.mxu0 %v1965
          %2004 = vmatpush.bf16.msra.mxu0 %v1964
          %2005 = vmatpush.bf16.msra.mxu0 %v1963
          %2006 = vmatpush.bf16.msra.mxu0 %v1962
          %2007 = vmatmul.bf16.gmra.mxu0 %v1853
          %v2008 = vpop.f32.mrf.mxu0
          %v2009 = vadd.f32 %v1996, %v2008
          %v2010 = vpop.f32.mrf.mxu0
          %2011 = vdwg.mxu0
          %2012 = vst [vmem:[#allocation18] sm:$0xff] %v2009
        $region108: #{tpu_custom_call.1} parent=71 // pred_fallthru
          _
        // Predicated region
        $region109: #{tpu_custom_call.1} parent=71 // pred_check
          %p2013 = pneg %p357
        $region110: #{tpu_custom_call.1} parent=71 // pred_check_branch
          %2015 = sbr.rel (%p2013) target = $region112
        $region111: #{tpu_custom_call.1} parent=71 // pred_region
          %2017 = vsyncadd [#allocation8], 0
          %s2018 = smul.addr %s37, 8
          %s2019 = scalar_lea.hbm %s13, %s2018
          %s2021 = sshll.u32 [#allocation18], 4
          %s2022 = int_to_ptr.vmem [resolvable:$true] %s2021
          %s2023 = sshll.u32 %s2019, 4
          %s2024 = int_to_ptr.hbm [resolvable:$true] %s2023
          %2026 = dma.vmem_to_hbm [thread:$0]  %s2022, 128, %s2024, [#allocation8]
        $region112: #{tpu_custom_call.1} parent=71 // pred_fallthru
          _
        // Predicated region
        $region113: #{tpu_custom_call.1} parent=71 // pred_check
          %p2027 = pneg %p357
        $region114: #{tpu_custom_call.1} parent=71 // pred_check_branch
          %2029 = sbr.rel (%p2027) target = $region116
        $region115: #{tpu_custom_call.1} parent=71 // pred_region
          %2031 = dma.done [#allocation8], 128
        $region116: #{tpu_custom_call.1} parent=71 // pred_fallthru
          _
      $region72: #{tpu_custom_call.1} parent=5 // pred_fallthru
        _
      %p2032 = scmp.le.s32.totalorder 2, %s28
      // Predicated region
      $region117: #{tpu_custom_call.1} parent=5 // pred_check
        %p2033 = pneg %p2032
      $region118: #{tpu_custom_call.1} parent=5 // pred_check_branch
        %2035 = sbr.rel (%p2033) target = $region120
      $region119: #{tpu_custom_call.1} parent=5 // pred_region
        %s2036 = ssub.s32 %s28, 2
      $region120: #{tpu_custom_call.1} parent=5 // pred_fallthru
        _
    $region6: #{tpu_custom_call.1} parent=1 // loop_footer
      %s32 = sadd.s32 1, %s28
    $region7: #{tpu_custom_call.1} parent=1 // loop_footer_branch
      %27 = sbr.rel target = $region3
    $region8: #{tpu_custom_call.1} parent=1 // loop_exit
      _
    %2037 = vsyncpa [#allocation7], 1
    %s2038 = scalar_lea.sflag [#allocation7], 1
    %2039 = vsyncpa %s2038, 1
    %2040 = vsyncpa [#allocation10], 1
    %s2041 = scalar_lea.sflag [#allocation10], 1
    %2042 = vsyncpa %s2041, 1
    %2043 = vsyncpa [#allocation13], 1
    %2044 = vsyncpa [#allocation16], 1
    %2045 = vsyncpa [#allocation8], 1
    %s2046 = scalar_lea.sflag [#allocation8], 1
    %2047 = vsyncpa %s2046, 1

</llo_original>
